<compile_context>
chip_gen: v5e
topology: v5e:2x2
jax: 0.10.0
libtpu: 0.0.40
codegen_flags: <defaults>
</compile_context>

<pallas_src>
import functools

import jax
import jax.numpy as jnp
from jax.experimental import pallas as pl
from jax.experimental.pallas import tpu as pltpu


def _round_up(n, m):
    return (n + m - 1) // m * m


# ----------------------------------------------------------------------------
# Pallas kernel: all L residual blocks for one token tile (tokens on lanes).
# ----------------------------------------------------------------------------
def _resnet_flow_kernel(xt_ref, *rest, dim, num_linear, num_blocks,
                        out_dims, compute_dtype):
    """rest = (w_0, ..., w_{num_linear-1}, packed_cols, o_ref).

    Layout: activations are (features, tokens); the 128-lane axis carries
    tokens, so every matmul output and the final store are lane-dense.
      xt_ref : (dim+1, TM)  f32   -- rows 0..dim-1 = x, row dim = t
      w_i    : (L, out_i, in_i)   -- compute_dtype, pre-transposed; the last
                                     layer has an extra zero output row.
      packed : (L, R, 1) f32      -- per block: [w_time(dim+1) | b_0 | ... | b_last]
                                     (w_time / b_last padded with a zero row).
    """
    w_refs = rest[:num_linear]
    p_ref = rest[num_linear]
    o_ref = rest[num_linear + 1]

    xt = xt_ref[...].astype(jnp.float32)              # (dim+1, TM)
    t = xt[dim:dim + 1, :]                            # (1, TM), constant

    # Fully unrolled over blocks (num_blocks = n_layers**2, small and static).
    for l in range(num_blocks):
        p = p_ref[l]                                  # (R, 1) f32 column params

        # TimeTanh gate, computed per block (not hoisted -> low vreg pressure);
        # the tanh issues on the EUP slot and overlaps the MXU dots below.
        # The padded last row of the gate weight is 0 => gate row `dim` is 0,
        # so the t row of the carried block never changes.
        gate = jnp.tanh(p[:dim + 1, :] * t)           # (dim+1, TM)

        h = xt
        off = dim + 1
        for i in range(num_linear):
            b = p[off:off + out_dims[i], :]           # (out_i, 1) f32
            off += out_dims[i]
            h = jnp.dot(w_refs[i][l], h.astype(compute_dtype),
                        preferred_element_type=jnp.float32) + b
            if i < num_linear - 1:
                h = jnp.maximum(h, 0.0)               # ReLU (no final act.)

        xt = xt + gate * h                            # residual (t row gets +0)

    o_ref[...] = xt[:dim, :].astype(o_ref.dtype)


# ----------------------------------------------------------------------------
# Parameter setup (glue, plain JAX).
# ----------------------------------------------------------------------------
def _spectral_normalize(w, n_iter=20):
    # Mirrors torch.nn.utils.spectral_norm's forward-time effect: divide the
    # weight by its largest singular value (power iteration).
    v = jnp.ones((w.shape[1],), w.dtype) / jnp.sqrt(jnp.float32(w.shape[1]))
    u = jnp.ones((w.shape[0],), w.dtype) / jnp.sqrt(jnp.float32(w.shape[0]))
    for _ in range(n_iter):
        u = w @ v
        u = u / (jnp.linalg.norm(u) + 1e-12)
        v = w.T @ u
        v = v / (jnp.linalg.norm(v) + 1e-12)
    sigma = u @ (w @ v)
    return w / sigma


def init_resnet_flow_params(key, dim, n_layers, hidden_dims, invertible=True):
    """Deterministic synthetic parameters for L = n_layers**2 residual blocks."""
    num_blocks = n_layers * n_layers
    dims = [dim + 1] + list(hidden_dims) + [dim]
    num_linear = len(dims) - 1

    wt_list = []
    w_lists = [[] for _ in range(num_linear)]
    b_lists = [[] for _ in range(num_linear)]

    for _ in range(num_blocks):
        key, kt = jax.random.split(key)
        wt_list.append(jax.random.normal(kt, (1, dim), jnp.float32))
        for i in range(num_linear):
            key, kw, kb = jax.random.split(key, 3)
            bound = 1.0 / (dims[i] ** 0.5)            # PyTorch Linear default
            w = jax.random.uniform(kw, (dims[i], dims[i + 1]), jnp.float32,
                                   -bound, bound)
            if invertible:
                w = _spectral_normalize(w)
            if i == num_linear - 1:
                b = jnp.zeros((1, dims[i + 1]), jnp.float32)   # stribor: zero
            else:
                b = jax.random.uniform(kb, (1, dims[i + 1]), jnp.float32,
                                       -bound, bound)
            w_lists[i].append(w)
            b_lists[i].append(b)

    return {
        "wt": jnp.stack(wt_list),                      # (L, 1, dim)
        "w": [jnp.stack(ws) for ws in w_lists],        # (L, in_i, out_i)
        "b": [jnp.stack(bs) for bs in b_lists],        # (L, 1, out_i)
    }


# ----------------------------------------------------------------------------
# Forward wrapper (glue + pallas_call).
# ----------------------------------------------------------------------------
def _vmem_footprint(shape, dtype):
    """Rough padded-VMEM bytes for one buffer of `shape`."""
    s = (1,) * max(0, 2 - len(shape)) + tuple(int(d) for d in shape)
    lead = 1
    for d in s[:-2]:
        lead *= d
    return lead * _round_up(s[-2], 8) * _round_up(s[-1], 128) * jnp.dtype(dtype).itemsize


def resnet_flow_forward(x, t, params, *, row_tile=1024,
                        compute_dtype=jnp.bfloat16):
    """x: (B, S, dim) or (B, 1, dim); t: (B, S, 1) -> (B, S, dim)."""
    if x.shape[-2] == 1:
        # repeat_interleave on a singleton axis == broadcast; no materialized
        # repeat before the fused (dim+1, N) input build below.
        x = jnp.broadcast_to(x, (x.shape[0], t.shape[-2], x.shape[-1]))

    B, S, dim = x.shape
    N = B * S
    dim_p = dim + 1

    # Tokens-on-lanes layout with t folded in as the last feature row.
    # TODO(synk): for very large N expose a (dim, N) interface so this relayout
    # and the output transpose below are not extra HBM passes.
    xt = jnp.concatenate([x, t], axis=-1).reshape(N, dim_p).T   # (dim+1, N) f32

    # Token tile: multiple of 256 (full MXU column passes on v6e/v7x, and a
    # multiple of the 128-lane width needed on v5e); capped so the grid keeps
    # >= 2 steps when N allows (both v7x TensorCores get fed).
    base = 256
    tile = _round_up(max(1, min(int(row_tile), N)), base)
    npad0 = _round_up(N, base)
    if npad0 >= 2 * base:
        tile = min(tile, _round_up(pl.cdiv(npad0, 2), base))
    Np = _round_up(N, tile)
    if Np != N:
        # Padded token columns carry t = 0.  TimeTanh has no bias, so their
        # gate is tanh(0) = 0 and padded columns never change; they are sliced
        # off after the kernel.  (Any future time-net with a bias would break
        # this invariant.)
        xt = jnp.pad(xt, ((0, 0), (0, Np - N)))

    num_blocks = int(params["wt"].shape[0])
    num_linear = len(params["w"])

    # Per-layer matmul weights, transposed to (L, out, in); the last layer gets
    # an extra zero output row so the carried (dim+1, TM) block keeps its t row.
    w_stacks, out_dims, in_dims = [], [], []
    for i in range(num_linear):
        w = jnp.swapaxes(params["w"][i], 1, 2)                  # (L, out, in)
        if i == num_linear - 1:
            w = jnp.pad(w, ((0, 0), (0, 1), (0, 0)))            # (L, dim+1, H)
        w_stacks.append(w.astype(compute_dtype))
        out_dims.append(int(w.shape[1]))
        in_dims.append(int(w.shape[2]))

    # Packed f32 column parameters per block: [w_time | b_0 | ... | b_last],
    # w_time / b_last zero-padded by one row (gate row dim+1 == 0).
    cols = [jnp.pad(jnp.swapaxes(params["wt"], 1, 2), ((0, 0), (0, 1), (0, 0)))]
    for i in range(num_linear):
        b = jnp.swapaxes(params["b"][i], 1, 2)                  # (L, out, 1)
        if i == num_linear - 1:
            b = jnp.pad(b, ((0, 0), (0, 1), (0, 0)))
        cols.append(b)
    packed = jnp.concatenate(cols, axis=1)                      # (L, R, 1) f32

    # Weight residency: whole-array resident with a constant index_map.  For
    # large hidden_dims / L, single-buffer them to halve VMEM residency (v7x
    # has only 64 MiB VMEM).  TODO(synk): for configs whose weights alone
    # exceed VMEM, add an inner 'arbitrary' grid axis over blocks and stream
    # per-block weight slices instead.
    weights_bytes = (sum(_vmem_footprint(w.shape, w.dtype) for w in w_stacks)
                     + _vmem_footprint(packed.shape, packed.dtype))
    single_buffer_weights = weights_bytes > (4 << 20)

    def _resident_spec(a):
        nd = a.ndim
        if single_buffer_weights:
            return pl.BlockSpec(a.shape, lambda i, _nd=nd: (0,) * _nd,
                                pipeline_mode=pl.Buffered(buffer_count=1))
        return pl.BlockSpec(a.shape, lambda i, _nd=nd: (0,) * _nd)

    in_specs = ([pl.BlockSpec((dim_p, tile), lambda i: (0, i))]
                + [_resident_spec(w) for w in w_stacks]
                + [_resident_spec(packed)])

    # Scoped-VMEM limit: only raised when tiles / weights grow past the small
    # defaults (v5e 16 MiB, v6e/v7x 32 MiB); capped well below v7x's 64 MiB.
    weight_buf = 1 if single_buffer_weights else 2
    vmem_need = (2 * _vmem_footprint((dim_p, tile), xt.dtype)
                 + 2 * _vmem_footprint((dim, tile), x.dtype)
                 + weight_buf * weights_bytes)
    cp_kwargs = {"dimension_semantics": ("parallel",)}
    if vmem_need > (12 << 20):
        cp_kwargs["vmem_limit_bytes"] = int(min(max(2 * vmem_need, 32 << 20),
                                                48 << 20))
    compiler_params = pltpu.CompilerParams(**cp_kwargs)

    # Advisory cost estimate so XLA schedules around the custom call.
    def _nbytes(a):
        return int(a.size) * jnp.dtype(a.dtype).itemsize
    mm_elems = sum(o * i for o, i in zip(out_dims, in_dims))
    cost = pl.CostEstimate(
        flops=2 * Np * num_blocks * mm_elems,
        transcendentals=Np * num_blocks * dim_p,
        bytes_accessed=(_nbytes(xt) + sum(_nbytes(w) for w in w_stacks)
                        + _nbytes(packed)
                        + Np * dim * jnp.dtype(x.dtype).itemsize),
    )

    kernel = functools.partial(_resnet_flow_kernel,
                               dim=dim,
                               num_linear=num_linear,
                               num_blocks=num_blocks,
                               out_dims=tuple(out_dims),
                               compute_dtype=compute_dtype)

    out = pl.pallas_call(
        kernel,
        grid=(Np // tile,),
        in_specs=in_specs,
        out_specs=pl.BlockSpec((dim, tile), lambda i: (0, i)),
        out_shape=jax.ShapeDtypeStruct((dim, Np), x.dtype),
        compiler_params=compiler_params,
        cost_estimate=cost,
    )(xt, *w_stacks, packed)

    return out[:, :N].T.reshape(B, S, dim)


# ----------------------------------------------------------------------------
# Pure-JAX reference (sanity check).
# ----------------------------------------------------------------------------
def resnet_flow_reference(x, t, params):
    if x.shape[-2] == 1:
        x = jnp.broadcast_to(x, (x.shape[0], t.shape[-2], x.shape[-1]))
    num_blocks = params["wt"].shape[0]
    num_linear = len(params["w"])
    hp = jax.lax.Precision.HIGHEST
    for l in range(num_blocks):
        h = jnp.concatenate([x, t], axis=-1)
        for i in range(num_linear):
            h = jnp.dot(h, params["w"][i][l], precision=hp) + params["b"][i][l]
            if i < num_linear - 1:
                h = jax.nn.relu(h)
        gate = jnp.tanh(params["wt"][l] * t)
        x = x + gate * h
    return x


def _quantize_matmul_weights(params):
    """bf16-round the matmul weights the same way the kernel's bf16 path does
    (biases / time-gate weights stay f32)."""
    return {
        "wt": params["wt"],
        "w": [w.astype(jnp.bfloat16).astype(jnp.float32) for w in params["w"]],
        "b": params["b"],
    }


if __name__ == "__main__":
    # Small, module-consistent shapes.
    dim, n_layers, hidden_dims = 4, 2, [32, 32]
    batch, seq = 2, 8

    key = jax.random.PRNGKey(0)
    kx, kt, kp = jax.random.split(key, 3)
    x = jax.random.normal(kx, (batch, seq, dim), jnp.float32)
    t = jax.random.uniform(kt, (batch, seq, 1), jnp.float32)

    # time_net='TimeTanh', time_hidden_dim=None, invertible=True
    params = init_resnet_flow_params(kp, dim, n_layers, hidden_dims,
                                     invertible=True)

    # --- f32 path: matches the pure-JAX (HIGHEST-precision) reference. ---
    out_f32 = jax.block_until_ready(
        resnet_flow_forward(x, t, params, compute_dtype=jnp.float32))
    ref_f32 = resnet_flow_reference(x, t, params)
    assert out_f32.shape == (batch, seq, dim)
    assert jnp.allclose(out_f32, ref_f32, atol=5e-3, rtol=5e-3), (
        float(jnp.max(jnp.abs(out_f32 - ref_f32))))

    # --- bf16-weight path (MXU-native): compared against a reference with the
    # same bf16-quantized matmul weights; the kernel additionally rounds the
    # dot activations to bf16, and this compounds through the serial residual
    # chain (keep compute_dtype=f32 for very deep configs). ---
    out_bf16 = jax.block_until_ready(
        resnet_flow_forward(x, t, params, compute_dtype=jnp.bfloat16))
    ref_bf16 = resnet_flow_reference(x, t, _quantize_matmul_weights(params))
    assert jnp.allclose(out_bf16, ref_bf16, atol=5e-2, rtol=5e-2), (
        float(jnp.max(jnp.abs(out_bf16 - ref_bf16))))

    # --- singleton-sequence broadcast branch (x: (B, 1, dim)). ---
    x1 = x[:, :1, :]
    out_b = jax.block_until_ready(
        resnet_flow_forward(x1, t, params, compute_dtype=jnp.float32))
    ref_b = resnet_flow_reference(x1, t, params)
    assert jnp.allclose(out_b, ref_b, atol=5e-3, rtol=5e-3), (
        float(jnp.max(jnp.abs(out_b - ref_b))))

    print("KERNEL_OK")
</pallas_src>

<mosaic_0001>
module attributes {stable_mosaic.version = 11 : i64} {
  func.func @_resnet_flow_kernel(%arg0: i32, %arg1: memref<5x256xf32, #tpu.memory_space<vmem>>, %arg2: memref<4x32x5xf32, #tpu.memory_space<vmem>>, %arg3: memref<4x32x32xf32, #tpu.memory_space<vmem>>, %arg4: memref<4x5x32xf32, #tpu.memory_space<vmem>>, %arg5: memref<4x74x1xf32, #tpu.memory_space<vmem>>, %arg6: memref<4x256xf32, #tpu.memory_space<vmem>>) attributes {dimension_semantics = [#tpu.dimension_semantics<parallel>], iteration_bounds = array<i64: 1>, scalar_prefetch = 0 : i64, scratch_operands = 0 : i64, tpu.core_type = #tpu.core_type<tc>, window_params = [{transform_indices = @transform_0, window_bounds = array<i64: 5, 256>}, {pipeline_mode = #tpu.pipeline_mode<synchronous>, transform_indices = @transform_1, window_bounds = array<i64: 4, 32, 5>}, {pipeline_mode = #tpu.pipeline_mode<synchronous>, transform_indices = @transform_2, window_bounds = array<i64: 4, 32, 32>}, {pipeline_mode = #tpu.pipeline_mode<synchronous>, transform_indices = @transform_3, window_bounds = array<i64: 4, 5, 32>}, {pipeline_mode = #tpu.pipeline_mode<synchronous>, transform_indices = @transform_4, window_bounds = array<i64: 4, 74, 1>}, {transform_indices = @transform_5, window_bounds = array<i64: 4, 256>}]} {
    %c0 = arith.constant 0 : index
    %c0_0 = arith.constant 0 : index
    %0 = vector.load %arg1[%c0, %c0_0] : memref<5x256xf32, #tpu.memory_space<vmem>>, vector<5x256xf32>
    %1 = vector.extract_strided_slice %0 {offsets = [4, 0], sizes = [1, 256], strides = [1, 1]} : vector<5x256xf32> to vector<1x256xf32>
    %c0_1 = arith.constant 0 : index
    %c0_2 = arith.constant 0 : index
    %c0_3 = arith.constant 0 : index
    %2 = vector.load %arg5[%c0_1, %c0_2, %c0_3] : memref<4x74x1xf32, #tpu.memory_space<vmem>>, vector<1x74x1xf32>
    %3 = vector.shape_cast %2 : vector<1x74x1xf32> to vector<74x1xf32>
    %4 = vector.extract_strided_slice %3 {offsets = [0, 0], sizes = [5, 1], strides = [1, 1]} : vector<74x1xf32> to vector<5x1xf32>
    %5 = vector.broadcast %4 : vector<5x1xf32> to vector<5x256xf32>
    %6 = vector.broadcast %1 : vector<1x256xf32> to vector<5x256xf32>
    %7 = arith.mulf %5, %6 : vector<5x256xf32>
    %8 = math.tanh %7 : vector<5x256xf32>
    %9 = vector.extract_strided_slice %3 {offsets = [5, 0], sizes = [32, 1], strides = [1, 1]} : vector<74x1xf32> to vector<32x1xf32>
    %c0_4 = arith.constant 0 : index
    %c0_5 = arith.constant 0 : index
    %c0_6 = arith.constant 0 : index
    %10 = vector.load %arg2[%c0_4, %c0_5, %c0_6] : memref<4x32x5xf32, #tpu.memory_space<vmem>>, vector<1x32x5xf32>
    %11 = vector.shape_cast %10 : vector<1x32x5xf32> to vector<32x5xf32>
    %cst = arith.constant dense<0.000000e+00> : vector<32x256xf32>
    %12 = tpu.matmul %11, %0, %cst {dimension_numbers = #tpu.dot_dimension_numbers<[1], [0], [0], [1], [0, 0, 1, 1], [], []>} : vector<32x5xf32>, vector<5x256xf32>, vector<32x256xf32> -> vector<32x256xf32>
    %13 = vector.broadcast %9 : vector<32x1xf32> to vector<32x256xf32>
    %14 = arith.addf %12, %13 : vector<32x256xf32>
    %cst_7 = arith.constant 0.000000e+00 : f32
    %15 = vector.broadcast %cst_7 : f32 to vector<32x256xf32>
    %16 = arith.maximumf %14, %15 : vector<32x256xf32>
    %17 = vector.extract_strided_slice %3 {offsets = [37, 0], sizes = [32, 1], strides = [1, 1]} : vector<74x1xf32> to vector<32x1xf32>
    %c0_8 = arith.constant 0 : index
    %c0_9 = arith.constant 0 : index
    %c0_10 = arith.constant 0 : index
    %18 = vector.load %arg3[%c0_8, %c0_9, %c0_10] : memref<4x32x32xf32, #tpu.memory_space<vmem>>, vector<1x32x32xf32>
    %19 = vector.shape_cast %18 : vector<1x32x32xf32> to vector<32x32xf32>
    %cst_11 = arith.constant dense<0.000000e+00> : vector<32x256xf32>
    %20 = tpu.matmul %19, %16, %cst_11 {dimension_numbers = #tpu.dot_dimension_numbers<[1], [0], [0], [1], [0, 0, 1, 1], [], []>} : vector<32x32xf32>, vector<32x256xf32>, vector<32x256xf32> -> vector<32x256xf32>
    %21 = vector.broadcast %17 : vector<32x1xf32> to vector<32x256xf32>
    %22 = arith.addf %20, %21 : vector<32x256xf32>
    %cst_12 = arith.constant 0.000000e+00 : f32
    %23 = vector.broadcast %cst_12 : f32 to vector<32x256xf32>
    %24 = arith.maximumf %22, %23 : vector<32x256xf32>
    %25 = vector.extract_strided_slice %3 {offsets = [69, 0], sizes = [5, 1], strides = [1, 1]} : vector<74x1xf32> to vector<5x1xf32>
    %c0_13 = arith.constant 0 : index
    %c0_14 = arith.constant 0 : index
    %c0_15 = arith.constant 0 : index
    %26 = vector.load %arg4[%c0_13, %c0_14, %c0_15] : memref<4x5x32xf32, #tpu.memory_space<vmem>>, vector<1x5x32xf32>
    %27 = vector.shape_cast %26 : vector<1x5x32xf32> to vector<5x32xf32>
    %cst_16 = arith.constant dense<0.000000e+00> : vector<5x256xf32>
    %28 = tpu.matmul %27, %24, %cst_16 {dimension_numbers = #tpu.dot_dimension_numbers<[1], [0], [0], [1], [0, 0, 1, 1], [], []>} : vector<5x32xf32>, vector<32x256xf32>, vector<5x256xf32> -> vector<5x256xf32>
    %29 = vector.broadcast %25 : vector<5x1xf32> to vector<5x256xf32>
    %30 = arith.addf %28, %29 : vector<5x256xf32>
    %31 = arith.mulf %8, %30 : vector<5x256xf32>
    %32 = arith.addf %0, %31 : vector<5x256xf32>
    %c1 = arith.constant 1 : index
    %c0_17 = arith.constant 0 : index
    %c0_18 = arith.constant 0 : index
    %33 = vector.load %arg5[%c1, %c0_17, %c0_18] : memref<4x74x1xf32, #tpu.memory_space<vmem>>, vector<1x74x1xf32>
    %34 = vector.shape_cast %33 : vector<1x74x1xf32> to vector<74x1xf32>
    %35 = vector.extract_strided_slice %34 {offsets = [0, 0], sizes = [5, 1], strides = [1, 1]} : vector<74x1xf32> to vector<5x1xf32>
    %36 = vector.broadcast %35 : vector<5x1xf32> to vector<5x256xf32>
    %37 = vector.broadcast %1 : vector<1x256xf32> to vector<5x256xf32>
    %38 = arith.mulf %36, %37 : vector<5x256xf32>
    %39 = math.tanh %38 : vector<5x256xf32>
    %40 = vector.extract_strided_slice %34 {offsets = [5, 0], sizes = [32, 1], strides = [1, 1]} : vector<74x1xf32> to vector<32x1xf32>
    %c1_19 = arith.constant 1 : index
    %c0_20 = arith.constant 0 : index
    %c0_21 = arith.constant 0 : index
    %41 = vector.load %arg2[%c1_19, %c0_20, %c0_21] : memref<4x32x5xf32, #tpu.memory_space<vmem>>, vector<1x32x5xf32>
    %42 = vector.shape_cast %41 : vector<1x32x5xf32> to vector<32x5xf32>
    %cst_22 = arith.constant dense<0.000000e+00> : vector<32x256xf32>
    %43 = tpu.matmul %42, %32, %cst_22 {dimension_numbers = #tpu.dot_dimension_numbers<[1], [0], [0], [1], [0, 0, 1, 1], [], []>} : vector<32x5xf32>, vector<5x256xf32>, vector<32x256xf32> -> vector<32x256xf32>
    %44 = vector.broadcast %40 : vector<32x1xf32> to vector<32x256xf32>
    %45 = arith.addf %43, %44 : vector<32x256xf32>
    %cst_23 = arith.constant 0.000000e+00 : f32
    %46 = vector.broadcast %cst_23 : f32 to vector<32x256xf32>
    %47 = arith.maximumf %45, %46 : vector<32x256xf32>
    %48 = vector.extract_strided_slice %34 {offsets = [37, 0], sizes = [32, 1], strides = [1, 1]} : vector<74x1xf32> to vector<32x1xf32>
    %c1_24 = arith.constant 1 : index
    %c0_25 = arith.constant 0 : index
    %c0_26 = arith.constant 0 : index
    %49 = vector.load %arg3[%c1_24, %c0_25, %c0_26] : memref<4x32x32xf32, #tpu.memory_space<vmem>>, vector<1x32x32xf32>
    %50 = vector.shape_cast %49 : vector<1x32x32xf32> to vector<32x32xf32>
    %cst_27 = arith.constant dense<0.000000e+00> : vector<32x256xf32>
    %51 = tpu.matmul %50, %47, %cst_27 {dimension_numbers = #tpu.dot_dimension_numbers<[1], [0], [0], [1], [0, 0, 1, 1], [], []>} : vector<32x32xf32>, vector<32x256xf32>, vector<32x256xf32> -> vector<32x256xf32>
    %52 = vector.broadcast %48 : vector<32x1xf32> to vector<32x256xf32>
    %53 = arith.addf %51, %52 : vector<32x256xf32>
    %cst_28 = arith.constant 0.000000e+00 : f32
    %54 = vector.broadcast %cst_28 : f32 to vector<32x256xf32>
    %55 = arith.maximumf %53, %54 : vector<32x256xf32>
    %56 = vector.extract_strided_slice %34 {offsets = [69, 0], sizes = [5, 1], strides = [1, 1]} : vector<74x1xf32> to vector<5x1xf32>
    %c1_29 = arith.constant 1 : index
    %c0_30 = arith.constant 0 : index
    %c0_31 = arith.constant 0 : index
    %57 = vector.load %arg4[%c1_29, %c0_30, %c0_31] : memref<4x5x32xf32, #tpu.memory_space<vmem>>, vector<1x5x32xf32>
    %58 = vector.shape_cast %57 : vector<1x5x32xf32> to vector<5x32xf32>
    %cst_32 = arith.constant dense<0.000000e+00> : vector<5x256xf32>
    %59 = tpu.matmul %58, %55, %cst_32 {dimension_numbers = #tpu.dot_dimension_numbers<[1], [0], [0], [1], [0, 0, 1, 1], [], []>} : vector<5x32xf32>, vector<32x256xf32>, vector<5x256xf32> -> vector<5x256xf32>
    %60 = vector.broadcast %56 : vector<5x1xf32> to vector<5x256xf32>
    %61 = arith.addf %59, %60 : vector<5x256xf32>
    %62 = arith.mulf %39, %61 : vector<5x256xf32>
    %63 = arith.addf %32, %62 : vector<5x256xf32>
    %c2 = arith.constant 2 : index
    %c0_33 = arith.constant 0 : index
    %c0_34 = arith.constant 0 : index
    %64 = vector.load %arg5[%c2, %c0_33, %c0_34] : memref<4x74x1xf32, #tpu.memory_space<vmem>>, vector<1x74x1xf32>
    %65 = vector.shape_cast %64 : vector<1x74x1xf32> to vector<74x1xf32>
    %66 = vector.extract_strided_slice %65 {offsets = [0, 0], sizes = [5, 1], strides = [1, 1]} : vector<74x1xf32> to vector<5x1xf32>
    %67 = vector.broadcast %66 : vector<5x1xf32> to vector<5x256xf32>
    %68 = vector.broadcast %1 : vector<1x256xf32> to vector<5x256xf32>
    %69 = arith.mulf %67, %68 : vector<5x256xf32>
    %70 = math.tanh %69 : vector<5x256xf32>
    %71 = vector.extract_strided_slice %65 {offsets = [5, 0], sizes = [32, 1], strides = [1, 1]} : vector<74x1xf32> to vector<32x1xf32>
    %c2_35 = arith.constant 2 : index
    %c0_36 = arith.constant 0 : index
    %c0_37 = arith.constant 0 : index
    %72 = vector.load %arg2[%c2_35, %c0_36, %c0_37] : memref<4x32x5xf32, #tpu.memory_space<vmem>>, vector<1x32x5xf32>
    %73 = vector.shape_cast %72 : vector<1x32x5xf32> to vector<32x5xf32>
    %cst_38 = arith.constant dense<0.000000e+00> : vector<32x256xf32>
    %74 = tpu.matmul %73, %63, %cst_38 {dimension_numbers = #tpu.dot_dimension_numbers<[1], [0], [0], [1], [0, 0, 1, 1], [], []>} : vector<32x5xf32>, vector<5x256xf32>, vector<32x256xf32> -> vector<32x256xf32>
    %75 = vector.broadcast %71 : vector<32x1xf32> to vector<32x256xf32>
    %76 = arith.addf %74, %75 : vector<32x256xf32>
    %cst_39 = arith.constant 0.000000e+00 : f32
    %77 = vector.broadcast %cst_39 : f32 to vector<32x256xf32>
    %78 = arith.maximumf %76, %77 : vector<32x256xf32>
    %79 = vector.extract_strided_slice %65 {offsets = [37, 0], sizes = [32, 1], strides = [1, 1]} : vector<74x1xf32> to vector<32x1xf32>
    %c2_40 = arith.constant 2 : index
    %c0_41 = arith.constant 0 : index
    %c0_42 = arith.constant 0 : index
    %80 = vector.load %arg3[%c2_40, %c0_41, %c0_42] : memref<4x32x32xf32, #tpu.memory_space<vmem>>, vector<1x32x32xf32>
    %81 = vector.shape_cast %80 : vector<1x32x32xf32> to vector<32x32xf32>
    %cst_43 = arith.constant dense<0.000000e+00> : vector<32x256xf32>
    %82 = tpu.matmul %81, %78, %cst_43 {dimension_numbers = #tpu.dot_dimension_numbers<[1], [0], [0], [1], [0, 0, 1, 1], [], []>} : vector<32x32xf32>, vector<32x256xf32>, vector<32x256xf32> -> vector<32x256xf32>
    %83 = vector.broadcast %79 : vector<32x1xf32> to vector<32x256xf32>
    %84 = arith.addf %82, %83 : vector<32x256xf32>
    %cst_44 = arith.constant 0.000000e+00 : f32
    %85 = vector.broadcast %cst_44 : f32 to vector<32x256xf32>
    %86 = arith.maximumf %84, %85 : vector<32x256xf32>
    %87 = vector.extract_strided_slice %65 {offsets = [69, 0], sizes = [5, 1], strides = [1, 1]} : vector<74x1xf32> to vector<5x1xf32>
    %c2_45 = arith.constant 2 : index
    %c0_46 = arith.constant 0 : index
    %c0_47 = arith.constant 0 : index
    %88 = vector.load %arg4[%c2_45, %c0_46, %c0_47] : memref<4x5x32xf32, #tpu.memory_space<vmem>>, vector<1x5x32xf32>
    %89 = vector.shape_cast %88 : vector<1x5x32xf32> to vector<5x32xf32>
    %cst_48 = arith.constant dense<0.000000e+00> : vector<5x256xf32>
    %90 = tpu.matmul %89, %86, %cst_48 {dimension_numbers = #tpu.dot_dimension_numbers<[1], [0], [0], [1], [0, 0, 1, 1], [], []>} : vector<5x32xf32>, vector<32x256xf32>, vector<5x256xf32> -> vector<5x256xf32>
    %91 = vector.broadcast %87 : vector<5x1xf32> to vector<5x256xf32>
    %92 = arith.addf %90, %91 : vector<5x256xf32>
    %93 = arith.mulf %70, %92 : vector<5x256xf32>
    %94 = arith.addf %63, %93 : vector<5x256xf32>
    %c3 = arith.constant 3 : index
    %c0_49 = arith.constant 0 : index
    %c0_50 = arith.constant 0 : index
    %95 = vector.load %arg5[%c3, %c0_49, %c0_50] : memref<4x74x1xf32, #tpu.memory_space<vmem>>, vector<1x74x1xf32>
    %96 = vector.shape_cast %95 : vector<1x74x1xf32> to vector<74x1xf32>
    %97 = vector.extract_strided_slice %96 {offsets = [0, 0], sizes = [5, 1], strides = [1, 1]} : vector<74x1xf32> to vector<5x1xf32>
    %98 = vector.broadcast %97 : vector<5x1xf32> to vector<5x256xf32>
    %99 = vector.broadcast %1 : vector<1x256xf32> to vector<5x256xf32>
    %100 = arith.mulf %98, %99 : vector<5x256xf32>
    %101 = math.tanh %100 : vector<5x256xf32>
    %102 = vector.extract_strided_slice %96 {offsets = [5, 0], sizes = [32, 1], strides = [1, 1]} : vector<74x1xf32> to vector<32x1xf32>
    %c3_51 = arith.constant 3 : index
    %c0_52 = arith.constant 0 : index
    %c0_53 = arith.constant 0 : index
    %103 = vector.load %arg2[%c3_51, %c0_52, %c0_53] : memref<4x32x5xf32, #tpu.memory_space<vmem>>, vector<1x32x5xf32>
    %104 = vector.shape_cast %103 : vector<1x32x5xf32> to vector<32x5xf32>
    %cst_54 = arith.constant dense<0.000000e+00> : vector<32x256xf32>
    %105 = tpu.matmul %104, %94, %cst_54 {dimension_numbers = #tpu.dot_dimension_numbers<[1], [0], [0], [1], [0, 0, 1, 1], [], []>} : vector<32x5xf32>, vector<5x256xf32>, vector<32x256xf32> -> vector<32x256xf32>
    %106 = vector.broadcast %102 : vector<32x1xf32> to vector<32x256xf32>
    %107 = arith.addf %105, %106 : vector<32x256xf32>
    %cst_55 = arith.constant 0.000000e+00 : f32
    %108 = vector.broadcast %cst_55 : f32 to vector<32x256xf32>
    %109 = arith.maximumf %107, %108 : vector<32x256xf32>
    %110 = vector.extract_strided_slice %96 {offsets = [37, 0], sizes = [32, 1], strides = [1, 1]} : vector<74x1xf32> to vector<32x1xf32>
    %c3_56 = arith.constant 3 : index
    %c0_57 = arith.constant 0 : index
    %c0_58 = arith.constant 0 : index
    %111 = vector.load %arg3[%c3_56, %c0_57, %c0_58] : memref<4x32x32xf32, #tpu.memory_space<vmem>>, vector<1x32x32xf32>
    %112 = vector.shape_cast %111 : vector<1x32x32xf32> to vector<32x32xf32>
    %cst_59 = arith.constant dense<0.000000e+00> : vector<32x256xf32>
    %113 = tpu.matmul %112, %109, %cst_59 {dimension_numbers = #tpu.dot_dimension_numbers<[1], [0], [0], [1], [0, 0, 1, 1], [], []>} : vector<32x32xf32>, vector<32x256xf32>, vector<32x256xf32> -> vector<32x256xf32>
    %114 = vector.broadcast %110 : vector<32x1xf32> to vector<32x256xf32>
    %115 = arith.addf %113, %114 : vector<32x256xf32>
    %cst_60 = arith.constant 0.000000e+00 : f32
    %116 = vector.broadcast %cst_60 : f32 to vector<32x256xf32>
    %117 = arith.maximumf %115, %116 : vector<32x256xf32>
    %118 = vector.extract_strided_slice %96 {offsets = [69, 0], sizes = [5, 1], strides = [1, 1]} : vector<74x1xf32> to vector<5x1xf32>
    %c3_61 = arith.constant 3 : index
    %c0_62 = arith.constant 0 : index
    %c0_63 = arith.constant 0 : index
    %119 = vector.load %arg4[%c3_61, %c0_62, %c0_63] : memref<4x5x32xf32, #tpu.memory_space<vmem>>, vector<1x5x32xf32>
    %120 = vector.shape_cast %119 : vector<1x5x32xf32> to vector<5x32xf32>
    %cst_64 = arith.constant dense<0.000000e+00> : vector<5x256xf32>
    %121 = tpu.matmul %120, %117, %cst_64 {dimension_numbers = #tpu.dot_dimension_numbers<[1], [0], [0], [1], [0, 0, 1, 1], [], []>} : vector<5x32xf32>, vector<32x256xf32>, vector<5x256xf32> -> vector<5x256xf32>
    %122 = vector.broadcast %118 : vector<5x1xf32> to vector<5x256xf32>
    %123 = arith.addf %121, %122 : vector<5x256xf32>
    %124 = arith.mulf %101, %123 : vector<5x256xf32>
    %125 = arith.addf %94, %124 : vector<5x256xf32>
    %126 = vector.extract_strided_slice %125 {offsets = [0, 0], sizes = [4, 256], strides = [1, 1]} : vector<5x256xf32> to vector<4x256xf32>
    %c0_65 = arith.constant 0 : index
    %c0_66 = arith.constant 0 : index
    %127 = vector.load %arg6[%c0_65, %c0_66] : memref<4x256xf32, #tpu.memory_space<vmem>>, vector<4x256xf32>
    tpu.vector_store %arg6[%c0_65, %c0_66], %126 {strides = array<i32>} : memref<4x256xf32, #tpu.memory_space<vmem>>, vector<4x256xf32>,
    return
  }
  func.func @transform_0(%arg0: i32) -> (i32, i32) {
    %c0_i32 = arith.constant 0 : i32
    %c0_i32_0 = arith.constant 0 : i32
    return %c0_i32, %arg0 : i32, i32
  }
  func.func @transform_1(%arg0: i32) -> (i32, i32, i32) {
    %c0_i32 = arith.constant 0 : i32
    %c0_i32_0 = arith.constant 0 : i32
    %c0_i32_1 = arith.constant 0 : i32
    %c0_i32_2 = arith.constant 0 : i32
    return %c0_i32, %c0_i32_0, %c0_i32_1 : i32, i32, i32
  }
  func.func @transform_2(%arg0: i32) -> (i32, i32, i32) {
    %c0_i32 = arith.constant 0 : i32
    %c0_i32_0 = arith.constant 0 : i32
    %c0_i32_1 = arith.constant 0 : i32
    %c0_i32_2 = arith.constant 0 : i32
    return %c0_i32, %c0_i32_0, %c0_i32_1 : i32, i32, i32
  }
  func.func @transform_3(%arg0: i32) -> (i32, i32, i32) {
    %c0_i32 = arith.constant 0 : i32
    %c0_i32_0 = arith.constant 0 : i32
    %c0_i32_1 = arith.constant 0 : i32
    %c0_i32_2 = arith.constant 0 : i32
    return %c0_i32, %c0_i32_0, %c0_i32_1 : i32, i32, i32
  }
  func.func @transform_4(%arg0: i32) -> (i32, i32, i32) {
    %c0_i32 = arith.constant 0 : i32
    %c0_i32_0 = arith.constant 0 : i32
    %c0_i32_1 = arith.constant 0 : i32
    %c0_i32_2 = arith.constant 0 : i32
    return %c0_i32, %c0_i32_0, %c0_i32_1 : i32, i32, i32
  }
  func.func @transform_5(%arg0: i32) -> (i32, i32) {
    %c0_i32 = arith.constant 0 : i32
    %c0_i32_0 = arith.constant 0 : i32
    return %c0_i32, %arg0 : i32, i32
  }
}

</mosaic_0001>

<llo_original>
// kernel: tpu_custom_call.1
$region0: #{tpu_custom_call.1}
  #allocation0 [shape = 'u32[]', space=smem, size = 0x4, offset = 0x4, fixed_abs, tag = 'smem constant byte address 0x4 - core index']
  #allocation1 [shape = 'u32[72,128]{1,0:T(1,128)}', space=vmem, size = 0x9000, scoped, tag = 'internal scratch']
  %s0 = inlined_call_operand.vmem [shape: f32[5,256], index: 0, kind: input, shape index: {}]
  %s1 = inlined_call_operand.vmem [shape: f32[4,32,5], index: 1, kind: input, shape index: {}]
  %s2 = inlined_call_operand.vmem [shape: f32[4,32,32], index: 2, kind: input, shape index: {}]
  %s3 = inlined_call_operand.vmem [shape: f32[4,5,32], index: 3, kind: input, shape index: {}]
  %s4 = inlined_call_operand.vmem [shape: f32[4,74,1], index: 4, kind: input, shape index: {}]
  %s5 = inlined_call_operand.hbm [shape: f32[4,256], index: 5, kind: output, shape index: {}]
  %s6 = sld [smem:[#allocation0]]
  $region30: #{tpu_custom_call.1} parent=0
    _
  %s8 = ssub.s32 1, %s6
  %s9 = scalar_select 0, %s8, %s6
  $region1: #{tpu_custom_call.1} parent=0
    #allocation2 [shape = 'u8[4096]{0}', space=vmem, size = 0x1000, scoped, tag = 'output window, operand 0, single buffered']
    #allocation3 [shape = 's32[1]{0}', space=sflag, size = 0x4, scoped, tag = 'scoped memory for tpu_custom_call.1']
    %10 = vsyncpa [#allocation3], 0
    // Predicated region
    $region2: #{tpu_custom_call.1} parent=1 // pred_check
      _
    $region3: #{tpu_custom_call.1} parent=1 // pred_check_branch
      %12 = sbr.rel (0) target = $region5
    $region4: #{tpu_custom_call.1} parent=1 // pred_region
      _
    $region5: #{tpu_custom_call.1} parent=1 // pred_fallthru
      _
    // Predicated region
    $region6: #{tpu_custom_call.1} parent=1 // pred_check
      _
    $region7: #{tpu_custom_call.1} parent=1 // pred_check_branch
      %14 = sbr.rel (0) target = $region9
    $region8: #{tpu_custom_call.1} parent=1 // pred_region
      _
    $region9: #{tpu_custom_call.1} parent=1 // pred_fallthru
      _
    // Predicated region
    $region10: #{tpu_custom_call.1} parent=1 // pred_check
      _
    $region11: #{tpu_custom_call.1} parent=1 // pred_check_branch
      %16 = sbr.rel (0) target = $region13
    $region12: #{tpu_custom_call.1} parent=1 // pred_region
      _
    $region13: #{tpu_custom_call.1} parent=1 // pred_fallthru
      _
    // Predicated region
    $region14: #{tpu_custom_call.1} parent=1 // pred_check
      _
    $region15: #{tpu_custom_call.1} parent=1 // pred_check_branch
      %18 = sbr.rel (0) target = $region17
    $region16: #{tpu_custom_call.1} parent=1 // pred_region
      _
    $region17: #{tpu_custom_call.1} parent=1 // pred_fallthru
      _
    // Predicated region
    $region18: #{tpu_custom_call.1} parent=1 // pred_check
      _
    $region19: #{tpu_custom_call.1} parent=1 // pred_check_branch
      %20 = sbr.rel (0) target = $region21
    $region20: #{tpu_custom_call.1} parent=1 // pred_region
      _
    $region21: #{tpu_custom_call.1} parent=1 // pred_fallthru
      _
    %v21 = vld [vmem:[%s0] sm:$0x1f]
    %v22 = vld [vmem:[%s0 + $0x8] sm:$0x1f]
    %v23 = vld [vmem:[%s4] sm:$0xff]
    %v24 = vld [vmem:[%s4 + $0x8] sm:$0xff]
    %v25 = vld [vmem:[%s4 + $0x10] sm:$0xff]
    %v26 = vld [vmem:[%s4 + $0x18] sm:$0xff]
    %v27 = vld [vmem:[%s4 + $0x20] sm:$0xff]
    %v28 = vld [vmem:[%s4 + $0x28] sm:$0xff]
    %v29 = vld [vmem:[%s4 + $0x30] sm:$0xff]
    %v30 = vld [vmem:[%s4 + $0x38] sm:$0xff]
    %v31 = vld [vmem:[%s4 + $0x40] sm:$0xff]
    %v32 = vld [vmem:[%s4 + $0x48] sm:$0x3]
    %34 = vset.pattern.permute.xlu0 0
    %35 = vperm.xlu0 %34, %v23
    %v36 = vpop.permute.xlu0 %35
    %v38 = vperm.slane %v21, 4
    %v39 = vperm.slane %v22, 4
    %v40 = vmul.f32 %v36, %v38
    %v41 = vmul.f32 %v36, %v39
    %v42 = vtanh.pop %v40
    %v43 = vtanh.pop %v41
    %v44 = vld [vmem:[%s1] sm:$0xff]
    %v45 = vld [vmem:[%s1 + $0x8] sm:$0xff]
    %v46 = vld [vmem:[%s1 + $0x10] sm:$0xff]
    %v47 = vld [vmem:[%s1 + $0x18] sm:$0xff]
    %49 = vset.pattern.permute.xlu0 0
    %50 = vperm.xlu0 %49, %v24
    %v51 = vpop.permute.xlu0 %50
    %53 = vset.pattern.permute.xlu0 0
    %54 = vperm.xlu0 %53, %v25
    %v55 = vpop.permute.xlu0 %54
    %57 = vset.pattern.permute.xlu0 0
    %58 = vperm.xlu0 %57, %v26
    %v59 = vpop.permute.xlu0 %58
    %61 = vset.pattern.permute.xlu0 0
    %62 = vperm.xlu0 %61, %v27
    %v63 = vpop.permute.xlu0 %62
    %vm64 = vcmask 1042432
    %v65 = vrot.slane %v36, 5
    %v66 = vrot.slane %v51, 5
    %v67 = vsel %vm64, %v65, %v66
    %v68 = vrot.slane %v55, 5
    %v69 = vsel %vm64, %v66, %v68
    %v70 = vrot.slane %v59, 5
    %v71 = vsel %vm64, %v68, %v70
    %v72 = vrot.slane %v63, 5
    %v73 = vsel %vm64, %v70, %v72
    %vm78 = vcmask 39936
    %v80 = vsel %vm78, %v44, 0
    %v83 = vsel %vm78, %v45, 0
    %v86 = vsel %vm78, %v46, 0
    %v89 = vsel %vm78, %v47, 0
    %vm91 = vcmask 1044480
    %v93 = vsel %vm91, %v21, 0
    %v96 = vsel %vm91, %v22, 0
    %98 = vmatpush.msra.mxu0 0.0
    %99 = vmatpush.msra.mxu0 0.0
    %100 = vmatpush.msra.mxu0 0.0
    %101 = vmatpush.msra.mxu0 0.0
    %102 = vmatpush.msra.mxu0 0.0
    %103 = vmatpush.msra.mxu0 0.0
    %104 = vmatpush.msra.mxu0 0.0
    %105 = vmatpush.msra.mxu0 0.0
    %106 = vmatpush.msra.mxu0 0.0
    %107 = vmatpush.msra.mxu0 0.0
    %108 = vmatpush.msra.mxu0 0.0
    %109 = vmatpush.msra.mxu0 0.0
    %110 = vmatpush.msra.mxu0 0.0
    %111 = vmatpush.msra.mxu0 0.0
    %112 = vmatpush.msra.mxu0 0.0
    %113 = vmatpush.msra.mxu0 %v93
    %114 = vmatmul.f32.gmra.mxu0 %v80
    %v115 = vpop.f32.mrf.mxu0
    %v116 = vadd.f32 %v67, %v115
    %117 = vmatmul.f32.gmra.mxu0 %v83
    %v118 = vpop.f32.mrf.mxu0
    %v119 = vadd.f32 %v69, %v118
    %120 = vmatmul.f32.gmra.mxu0 %v86
    %v121 = vpop.f32.mrf.mxu0
    %v122 = vadd.f32 %v71, %v121
    %123 = vmatmul.f32.gmra.mxu0 %v89
    %v124 = vpop.f32.mrf.mxu0
    %v125 = vadd.f32 %v73, %v124
    %126 = vdwg.mxu0
    %127 = vmatpush.msra.mxu0 0.0
    %128 = vmatpush.msra.mxu0 0.0
    %129 = vmatpush.msra.mxu0 0.0
    %130 = vmatpush.msra.mxu0 0.0
    %131 = vmatpush.msra.mxu0 0.0
    %132 = vmatpush.msra.mxu0 0.0
    %133 = vmatpush.msra.mxu0 0.0
    %134 = vmatpush.msra.mxu0 0.0
    %135 = vmatpush.msra.mxu0 0.0
    %136 = vmatpush.msra.mxu0 0.0
    %137 = vmatpush.msra.mxu0 0.0
    %138 = vmatpush.msra.mxu0 0.0
    %139 = vmatpush.msra.mxu0 0.0
    %140 = vmatpush.msra.mxu0 0.0
    %141 = vmatpush.msra.mxu0 0.0
    %142 = vmatpush.msra.mxu0 %v96
    %143 = vmatmul.f32.gmra.mxu0 %v80
    %v144 = vpop.f32.mrf.mxu0
    %v145 = vadd.f32 %v67, %v144
    %146 = vmatmul.f32.gmra.mxu0 %v83
    %v147 = vpop.f32.mrf.mxu0
    %v148 = vadd.f32 %v69, %v147
    %149 = vmatmul.f32.gmra.mxu0 %v86
    %v150 = vpop.f32.mrf.mxu0
    %v151 = vadd.f32 %v71, %v150
    %152 = vmatmul.f32.gmra.mxu0 %v89
    %v153 = vpop.f32.mrf.mxu0
    %v154 = vadd.f32 %v73, %v153
    %155 = vdwg.mxu0
    %v156 = vmax.f32 %v116, 0.0
    %v157 = vmax.f32 %v145, 0.0
    %v158 = vmax.f32 %v119, 0.0
    %v159 = vmax.f32 %v148, 0.0
    %v160 = vmax.f32 %v122, 0.0
    %v161 = vmax.f32 %v151, 0.0
    %v162 = vmax.f32 %v125, 0.0
    %v163 = vmax.f32 %v154, 0.0
    %v164 = vld [vmem:[%s2] sm:$0xff]
    %v165 = vld [vmem:[%s2 + $0x8] sm:$0xff]
    %v166 = vld [vmem:[%s2 + $0x10] sm:$0xff]
    %v167 = vld [vmem:[%s2 + $0x18] sm:$0xff]
    %169 = vset.pattern.permute.xlu0 0
    %170 = vperm.xlu0 %169, %v28
    %v171 = vpop.permute.xlu0 %170
    %173 = vset.pattern.permute.xlu0 0
    %174 = vperm.xlu0 %173, %v29
    %v175 = vpop.permute.xlu0 %174
    %177 = vset.pattern.permute.xlu0 0
    %178 = vperm.xlu0 %177, %v30
    %v179 = vpop.permute.xlu0 %178
    %181 = vset.pattern.permute.xlu0 0
    %182 = vperm.xlu0 %181, %v31
    %v183 = vpop.permute.xlu0 %182
    %v184 = vrot.slane %v171, 5
    %v185 = vsel %vm64, %v72, %v184
    %v186 = vrot.slane %v175, 5
    %v187 = vsel %vm64, %v184, %v186
    %v188 = vrot.slane %v179, 5
    %v189 = vsel %vm64, %v186, %v188
    %v190 = vrot.slane %v183, 5
    %v191 = vsel %vm64, %v188, %v190
    %vm196 = vcmask 261120
    %v198 = vsel %vm196, %v164, 0
    %v201 = vsel %vm196, %v165, 0
    %v204 = vsel %vm196, %v166, 0
    %v207 = vsel %vm196, %v167, 0
    %209 = vmatpush.msra.mxu0 0.0
    %210 = vmatpush.msra.mxu0 0.0
    %211 = vmatpush.msra.mxu0 0.0
    %212 = vmatpush.msra.mxu0 0.0
    %213 = vmatpush.msra.mxu0 0.0
    %214 = vmatpush.msra.mxu0 0.0
    %215 = vmatpush.msra.mxu0 0.0
    %216 = vmatpush.msra.mxu0 0.0
    %217 = vmatpush.msra.mxu0 0.0
    %218 = vmatpush.msra.mxu0 0.0
    %219 = vmatpush.msra.mxu0 0.0
    %220 = vmatpush.msra.mxu0 0.0
    %221 = vmatpush.msra.mxu0 %v162
    %222 = vmatpush.msra.mxu0 %v160
    %223 = vmatpush.msra.mxu0 %v158
    %224 = vmatpush.msra.mxu0 %v156
    %225 = vmatmul.f32.gmra.mxu0 %v198
    %v226 = vpop.f32.mrf.mxu0
    %v227 = vadd.f32 %v185, %v226
    %228 = vmatmul.f32.gmra.mxu0 %v201
    %v229 = vpop.f32.mrf.mxu0
    %v230 = vadd.f32 %v187, %v229
    %231 = vmatmul.f32.gmra.mxu0 %v204
    %v232 = vpop.f32.mrf.mxu0
    %v233 = vadd.f32 %v189, %v232
    %234 = vmatmul.f32.gmra.mxu0 %v207
    %v235 = vpop.f32.mrf.mxu0
    %v236 = vadd.f32 %v191, %v235
    %237 = vdwg.mxu0
    %238 = vmatpush.msra.mxu0 0.0
    %239 = vmatpush.msra.mxu0 0.0
    %240 = vmatpush.msra.mxu0 0.0
    %241 = vmatpush.msra.mxu0 0.0
    %242 = vmatpush.msra.mxu0 0.0
    %243 = vmatpush.msra.mxu0 0.0
    %244 = vmatpush.msra.mxu0 0.0
    %245 = vmatpush.msra.mxu0 0.0
    %246 = vmatpush.msra.mxu0 0.0
    %247 = vmatpush.msra.mxu0 0.0
    %248 = vmatpush.msra.mxu0 0.0
    %249 = vmatpush.msra.mxu0 0.0
    %250 = vmatpush.msra.mxu0 %v163
    %251 = vmatpush.msra.mxu0 %v161
    %252 = vmatpush.msra.mxu0 %v159
    %253 = vmatpush.msra.mxu0 %v157
    %254 = vmatmul.f32.gmra.mxu0 %v198
    %v255 = vpop.f32.mrf.mxu0
    %v256 = vadd.f32 %v185, %v255
    %257 = vmatmul.f32.gmra.mxu0 %v201
    %v258 = vpop.f32.mrf.mxu0
    %v259 = vadd.f32 %v187, %v258
    %260 = vmatmul.f32.gmra.mxu0 %v204
    %v261 = vpop.f32.mrf.mxu0
    %v262 = vadd.f32 %v189, %v261
    %263 = vmatmul.f32.gmra.mxu0 %v207
    %v264 = vpop.f32.mrf.mxu0
    %v265 = vadd.f32 %v191, %v264
    %266 = vdwg.mxu0
    %v267 = vmax.f32 %v227, 0.0
    %v268 = vmax.f32 %v256, 0.0
    %v269 = vmax.f32 %v230, 0.0
    %v270 = vmax.f32 %v259, 0.0
    %v271 = vmax.f32 %v233, 0.0
    %v272 = vmax.f32 %v262, 0.0
    %v273 = vmax.f32 %v236, 0.0
    %v274 = vmax.f32 %v265, 0.0
    %v275 = vld [vmem:[%s3] sm:$0x1f]
    %277 = vset.pattern.permute.xlu0 0
    %278 = vperm.xlu0 %277, %v32
    %v279 = vpop.permute.xlu0 %278
    %v280 = vrot.slane %v279, 5
    %v281 = vsel %vm64, %v190, %v280
    %v284 = vsel %vm196, %v275, 0
    %286 = vmatpush.msra.mxu0 0.0
    %287 = vmatpush.msra.mxu0 0.0
    %288 = vmatpush.msra.mxu0 0.0
    %289 = vmatpush.msra.mxu0 0.0
    %290 = vmatpush.msra.mxu0 0.0
    %291 = vmatpush.msra.mxu0 0.0
    %292 = vmatpush.msra.mxu0 0.0
    %293 = vmatpush.msra.mxu0 0.0
    %294 = vmatpush.msra.mxu0 0.0
    %295 = vmatpush.msra.mxu0 0.0
    %296 = vmatpush.msra.mxu0 0.0
    %297 = vmatpush.msra.mxu0 0.0
    %298 = vmatpush.msra.mxu0 %v273
    %299 = vmatpush.msra.mxu0 %v271
    %300 = vmatpush.msra.mxu0 %v269
    %301 = vmatpush.msra.mxu0 %v267
    %302 = vmatmul.f32.gmra.mxu0 %v284
    %v303 = vpop.f32.mrf.mxu0
    %v304 = vadd.f32 %v281, %v303
    %305 = vdwg.mxu0
    %306 = vmatpush.msra.mxu0 0.0
    %307 = vmatpush.msra.mxu0 0.0
    %308 = vmatpush.msra.mxu0 0.0
    %309 = vmatpush.msra.mxu0 0.0
    %310 = vmatpush.msra.mxu0 0.0
    %311 = vmatpush.msra.mxu0 0.0
    %312 = vmatpush.msra.mxu0 0.0
    %313 = vmatpush.msra.mxu0 0.0
    %314 = vmatpush.msra.mxu0 0.0
    %315 = vmatpush.msra.mxu0 0.0
    %316 = vmatpush.msra.mxu0 0.0
    %317 = vmatpush.msra.mxu0 0.0
    %318 = vmatpush.msra.mxu0 %v274
    %319 = vmatpush.msra.mxu0 %v272
    %320 = vmatpush.msra.mxu0 %v270
    %321 = vmatpush.msra.mxu0 %v268
    %322 = vmatmul.f32.gmra.mxu0 %v284
    %v323 = vpop.f32.mrf.mxu0
    %v324 = vadd.f32 %v281, %v323
    %325 = vdwg.mxu0
    %v326 = vmul.f32 %v42, %v304
    %v327 = vmul.f32 %v43, %v324
    %v328 = vadd.f32 %v21, %v326
    %v329 = vadd.f32 %v22, %v327
    %s330 = scalar_lea.vmem %s4, 80
    %v331 = vld [vmem:[%s330] sm:$0xff]
    %v332 = vld [vmem:[%s330 + $0x8] sm:$0xff]
    %v333 = vld [vmem:[%s330 + $0x10] sm:$0xff]
    %v334 = vld [vmem:[%s330 + $0x18] sm:$0xff]
    %v335 = vld [vmem:[%s330 + $0x20] sm:$0xff]
    %v336 = vld [vmem:[%s330 + $0x28] sm:$0xff]
    %v337 = vld [vmem:[%s330 + $0x30] sm:$0xff]
    %v338 = vld [vmem:[%s330 + $0x38] sm:$0xff]
    %v339 = vld [vmem:[%s330 + $0x40] sm:$0xff]
    %v340 = vld [vmem:[%s330 + $0x48] sm:$0x3]
    %342 = vset.pattern.permute.xlu0 0
    %343 = vperm.xlu0 %342, %v331
    %v344 = vpop.permute.xlu0 %343
    %v346 = vmul.f32 %v344, %v38
    %v347 = vmul.f32 %v344, %v39
    %v348 = vtanh.pop %v346
    %v349 = vtanh.pop %v347
    %s350 = scalar_lea.vmem %s1, 32
    %v351 = vld [vmem:[%s350] sm:$0xff]
    %v352 = vld [vmem:[%s350 + $0x8] sm:$0xff]
    %v353 = vld [vmem:[%s350 + $0x10] sm:$0xff]
    %v354 = vld [vmem:[%s350 + $0x18] sm:$0xff]
    %356 = vset.pattern.permute.xlu0 0
    %357 = vperm.xlu0 %356, %v332
    %v358 = vpop.permute.xlu0 %357
    %360 = vset.pattern.permute.xlu0 0
    %361 = vperm.xlu0 %360, %v333
    %v362 = vpop.permute.xlu0 %361
    %364 = vset.pattern.permute.xlu0 0
    %365 = vperm.xlu0 %364, %v334
    %v366 = vpop.permute.xlu0 %365
    %368 = vset.pattern.permute.xlu0 0
    %369 = vperm.xlu0 %368, %v335
    %v370 = vpop.permute.xlu0 %369
    %v371 = vrot.slane %v344, 5
    %v372 = vrot.slane %v358, 5
    %v373 = vsel %vm64, %v371, %v372
    %v374 = vrot.slane %v362, 5
    %v375 = vsel %vm64, %v372, %v374
    %v376 = vrot.slane %v366, 5
    %v377 = vsel %vm64, %v374, %v376
    %v378 = vrot.slane %v370, 5
    %v379 = vsel %vm64, %v376, %v378
    %v385 = vsel %vm78, %v351, 0
    %v388 = vsel %vm78, %v352, 0
    %v391 = vsel %vm78, %v353, 0
    %v394 = vsel %vm78, %v354, 0
    %v397 = vsel %vm91, %v328, 0
    %v400 = vsel %vm91, %v329, 0
    %402 = vmatpush.msra.mxu0 0.0
    %403 = vmatpush.msra.mxu0 0.0
    %404 = vmatpush.msra.mxu0 0.0
    %405 = vmatpush.msra.mxu0 0.0
    %406 = vmatpush.msra.mxu0 0.0
    %407 = vmatpush.msra.mxu0 0.0
    %408 = vmatpush.msra.mxu0 0.0
    %409 = vmatpush.msra.mxu0 0.0
    %410 = vmatpush.msra.mxu0 0.0
    %411 = vmatpush.msra.mxu0 0.0
    %412 = vmatpush.msra.mxu0 0.0
    %413 = vmatpush.msra.mxu0 0.0
    %414 = vmatpush.msra.mxu0 0.0
    %415 = vmatpush.msra.mxu0 0.0
    %416 = vmatpush.msra.mxu0 0.0
    %417 = vmatpush.msra.mxu0 %v397
    %418 = vmatmul.f32.gmra.mxu0 %v385
    %v419 = vpop.f32.mrf.mxu0
    %v420 = vadd.f32 %v373, %v419
    %421 = vmatmul.f32.gmra.mxu0 %v388
    %v422 = vpop.f32.mrf.mxu0
    %v423 = vadd.f32 %v375, %v422
    %424 = vmatmul.f32.gmra.mxu0 %v391
    %v425 = vpop.f32.mrf.mxu0
    %v426 = vadd.f32 %v377, %v425
    %427 = vmatmul.f32.gmra.mxu0 %v394
    %v428 = vpop.f32.mrf.mxu0
    %v429 = vadd.f32 %v379, %v428
    %430 = vdwg.mxu0
    %431 = vmatpush.msra.mxu0 0.0
    %432 = vmatpush.msra.mxu0 0.0
    %433 = vmatpush.msra.mxu0 0.0
    %434 = vmatpush.msra.mxu0 0.0
    %435 = vmatpush.msra.mxu0 0.0
    %436 = vmatpush.msra.mxu0 0.0
    %437 = vmatpush.msra.mxu0 0.0
    %438 = vmatpush.msra.mxu0 0.0
    %439 = vmatpush.msra.mxu0 0.0
    %440 = vmatpush.msra.mxu0 0.0
    %441 = vmatpush.msra.mxu0 0.0
    %442 = vmatpush.msra.mxu0 0.0
    %443 = vmatpush.msra.mxu0 0.0
    %444 = vmatpush.msra.mxu0 0.0
    %445 = vmatpush.msra.mxu0 0.0
    %446 = vmatpush.msra.mxu0 %v400
    %447 = vmatmul.f32.gmra.mxu0 %v385
    %v448 = vpop.f32.mrf.mxu0
    %v449 = vadd.f32 %v373, %v448
    %450 = vmatmul.f32.gmra.mxu0 %v388
    %v451 = vpop.f32.mrf.mxu0
    %v452 = vadd.f32 %v375, %v451
    %453 = vmatmul.f32.gmra.mxu0 %v391
    %v454 = vpop.f32.mrf.mxu0
    %v455 = vadd.f32 %v377, %v454
    %456 = vmatmul.f32.gmra.mxu0 %v394
    %v457 = vpop.f32.mrf.mxu0
    %v458 = vadd.f32 %v379, %v457
    %459 = vdwg.mxu0
    %v460 = vmax.f32 %v420, 0.0
    %v461 = vmax.f32 %v449, 0.0
    %v462 = vmax.f32 %v423, 0.0
    %v463 = vmax.f32 %v452, 0.0
    %v464 = vmax.f32 %v426, 0.0
    %v465 = vmax.f32 %v455, 0.0
    %v466 = vmax.f32 %v429, 0.0
    %v467 = vmax.f32 %v458, 0.0
    %s468 = scalar_lea.vmem %s2, 32
    %v469 = vld [vmem:[%s468] sm:$0xff]
    %v470 = vld [vmem:[%s468 + $0x8] sm:$0xff]
    %v471 = vld [vmem:[%s468 + $0x10] sm:$0xff]
    %v472 = vld [vmem:[%s468 + $0x18] sm:$0xff]
    %474 = vset.pattern.permute.xlu0 0
    %475 = vperm.xlu0 %474, %v336
    %v476 = vpop.permute.xlu0 %475
    %478 = vset.pattern.permute.xlu0 0
    %479 = vperm.xlu0 %478, %v337
    %v480 = vpop.permute.xlu0 %479
    %482 = vset.pattern.permute.xlu0 0
    %483 = vperm.xlu0 %482, %v338
    %v484 = vpop.permute.xlu0 %483
    %486 = vset.pattern.permute.xlu0 0
    %487 = vperm.xlu0 %486, %v339
    %v488 = vpop.permute.xlu0 %487
    %v489 = vrot.slane %v476, 5
    %v490 = vsel %vm64, %v378, %v489
    %v491 = vrot.slane %v480, 5
    %v492 = vsel %vm64, %v489, %v491
    %v493 = vrot.slane %v484, 5
    %v494 = vsel %vm64, %v491, %v493
    %v495 = vrot.slane %v488, 5
    %v496 = vsel %vm64, %v493, %v495
    %v502 = vsel %vm196, %v469, 0
    %v505 = vsel %vm196, %v470, 0
    %v508 = vsel %vm196, %v471, 0
    %v511 = vsel %vm196, %v472, 0
    %513 = vmatpush.msra.mxu0 0.0
    %514 = vmatpush.msra.mxu0 0.0
    %515 = vmatpush.msra.mxu0 0.0
    %516 = vmatpush.msra.mxu0 0.0
    %517 = vmatpush.msra.mxu0 0.0
    %518 = vmatpush.msra.mxu0 0.0
    %519 = vmatpush.msra.mxu0 0.0
    %520 = vmatpush.msra.mxu0 0.0
    %521 = vmatpush.msra.mxu0 0.0
    %522 = vmatpush.msra.mxu0 0.0
    %523 = vmatpush.msra.mxu0 0.0
    %524 = vmatpush.msra.mxu0 0.0
    %525 = vmatpush.msra.mxu0 %v466
    %526 = vmatpush.msra.mxu0 %v464
    %527 = vmatpush.msra.mxu0 %v462
    %528 = vmatpush.msra.mxu0 %v460
    %529 = vmatmul.f32.gmra.mxu0 %v502
    %v530 = vpop.f32.mrf.mxu0
    %v531 = vadd.f32 %v490, %v530
    %532 = vmatmul.f32.gmra.mxu0 %v505
    %v533 = vpop.f32.mrf.mxu0
    %v534 = vadd.f32 %v492, %v533
    %535 = vmatmul.f32.gmra.mxu0 %v508
    %v536 = vpop.f32.mrf.mxu0
    %v537 = vadd.f32 %v494, %v536
    %538 = vmatmul.f32.gmra.mxu0 %v511
    %v539 = vpop.f32.mrf.mxu0
    %v540 = vadd.f32 %v496, %v539
    %541 = vdwg.mxu0
    %542 = vmatpush.msra.mxu0 0.0
    %543 = vmatpush.msra.mxu0 0.0
    %544 = vmatpush.msra.mxu0 0.0
    %545 = vmatpush.msra.mxu0 0.0
    %546 = vmatpush.msra.mxu0 0.0
    %547 = vmatpush.msra.mxu0 0.0
    %548 = vmatpush.msra.mxu0 0.0
    %549 = vmatpush.msra.mxu0 0.0
    %550 = vmatpush.msra.mxu0 0.0
    %551 = vmatpush.msra.mxu0 0.0
    %552 = vmatpush.msra.mxu0 0.0
    %553 = vmatpush.msra.mxu0 0.0
    %554 = vmatpush.msra.mxu0 %v467
    %555 = vmatpush.msra.mxu0 %v465
    %556 = vmatpush.msra.mxu0 %v463
    %557 = vmatpush.msra.mxu0 %v461
    %558 = vmatmul.f32.gmra.mxu0 %v502
    %v559 = vpop.f32.mrf.mxu0
    %v560 = vadd.f32 %v490, %v559
    %561 = vmatmul.f32.gmra.mxu0 %v505
    %v562 = vpop.f32.mrf.mxu0
    %v563 = vadd.f32 %v492, %v562
    %564 = vmatmul.f32.gmra.mxu0 %v508
    %v565 = vpop.f32.mrf.mxu0
    %v566 = vadd.f32 %v494, %v565
    %567 = vmatmul.f32.gmra.mxu0 %v511
    %v568 = vpop.f32.mrf.mxu0
    %v569 = vadd.f32 %v496, %v568
    %570 = vdwg.mxu0
    %v571 = vmax.f32 %v531, 0.0
    %v572 = vmax.f32 %v560, 0.0
    %v573 = vmax.f32 %v534, 0.0
    %v574 = vmax.f32 %v563, 0.0
    %v575 = vmax.f32 %v537, 0.0
    %v576 = vmax.f32 %v566, 0.0
    %v577 = vmax.f32 %v540, 0.0
    %v578 = vmax.f32 %v569, 0.0
    %s579 = scalar_lea.vmem %s3, 8
    %v580 = vld [vmem:[%s579] sm:$0x1f]
    %582 = vset.pattern.permute.xlu0 0
    %583 = vperm.xlu0 %582, %v340
    %v584 = vpop.permute.xlu0 %583
    %v585 = vrot.slane %v584, 5
    %v586 = vsel %vm64, %v495, %v585
    %v589 = vsel %vm196, %v580, 0
    %591 = vmatpush.msra.mxu0 0.0
    %592 = vmatpush.msra.mxu0 0.0
    %593 = vmatpush.msra.mxu0 0.0
    %594 = vmatpush.msra.mxu0 0.0
    %595 = vmatpush.msra.mxu0 0.0
    %596 = vmatpush.msra.mxu0 0.0
    %597 = vmatpush.msra.mxu0 0.0
    %598 = vmatpush.msra.mxu0 0.0
    %599 = vmatpush.msra.mxu0 0.0
    %600 = vmatpush.msra.mxu0 0.0
    %601 = vmatpush.msra.mxu0 0.0
    %602 = vmatpush.msra.mxu0 0.0
    %603 = vmatpush.msra.mxu0 %v577
    %604 = vmatpush.msra.mxu0 %v575
    %605 = vmatpush.msra.mxu0 %v573
    %606 = vmatpush.msra.mxu0 %v571
    %607 = vmatmul.f32.gmra.mxu0 %v589
    %v608 = vpop.f32.mrf.mxu0
    %v609 = vadd.f32 %v586, %v608
    %610 = vdwg.mxu0
    %611 = vmatpush.msra.mxu0 0.0
    %612 = vmatpush.msra.mxu0 0.0
    %613 = vmatpush.msra.mxu0 0.0
    %614 = vmatpush.msra.mxu0 0.0
    %615 = vmatpush.msra.mxu0 0.0
    %616 = vmatpush.msra.mxu0 0.0
    %617 = vmatpush.msra.mxu0 0.0
    %618 = vmatpush.msra.mxu0 0.0
    %619 = vmatpush.msra.mxu0 0.0
    %620 = vmatpush.msra.mxu0 0.0
    %621 = vmatpush.msra.mxu0 0.0
    %622 = vmatpush.msra.mxu0 0.0
    %623 = vmatpush.msra.mxu0 %v578
    %624 = vmatpush.msra.mxu0 %v576
    %625 = vmatpush.msra.mxu0 %v574
    %626 = vmatpush.msra.mxu0 %v572
    %627 = vmatmul.f32.gmra.mxu0 %v589
    %v628 = vpop.f32.mrf.mxu0
    %v629 = vadd.f32 %v586, %v628
    %630 = vdwg.mxu0
    %v631 = vmul.f32 %v348, %v609
    %v632 = vmul.f32 %v349, %v629
    %v633 = vadd.f32 %v328, %v631
    %v634 = vadd.f32 %v329, %v632
    %s635 = scalar_lea.vmem %s4, 160
    %v636 = vld [vmem:[%s635] sm:$0xff]
    %v637 = vld [vmem:[%s635 + $0x8] sm:$0xff]
    %v638 = vld [vmem:[%s635 + $0x10] sm:$0xff]
    %v639 = vld [vmem:[%s635 + $0x18] sm:$0xff]
    %v640 = vld [vmem:[%s635 + $0x20] sm:$0xff]
    %v641 = vld [vmem:[%s635 + $0x28] sm:$0xff]
    %v642 = vld [vmem:[%s635 + $0x30] sm:$0xff]
    %v643 = vld [vmem:[%s635 + $0x38] sm:$0xff]
    %v644 = vld [vmem:[%s635 + $0x40] sm:$0xff]
    %v645 = vld [vmem:[%s635 + $0x48] sm:$0x3]
    %647 = vset.pattern.permute.xlu0 0
    %648 = vperm.xlu0 %647, %v636
    %v649 = vpop.permute.xlu0 %648
    %v651 = vmul.f32 %v649, %v38
    %v652 = vmul.f32 %v649, %v39
    %v653 = vtanh.pop %v651
    %v654 = vtanh.pop %v652
    %s655 = scalar_lea.vmem %s1, 64
    %v656 = vld [vmem:[%s655] sm:$0xff]
    %v657 = vld [vmem:[%s655 + $0x8] sm:$0xff]
    %v658 = vld [vmem:[%s655 + $0x10] sm:$0xff]
    %v659 = vld [vmem:[%s655 + $0x18] sm:$0xff]
    %661 = vset.pattern.permute.xlu0 0
    %662 = vperm.xlu0 %661, %v637
    %v663 = vpop.permute.xlu0 %662
    %665 = vset.pattern.permute.xlu0 0
    %666 = vperm.xlu0 %665, %v638
    %v667 = vpop.permute.xlu0 %666
    %669 = vset.pattern.permute.xlu0 0
    %670 = vperm.xlu0 %669, %v639
    %v671 = vpop.permute.xlu0 %670
    %673 = vset.pattern.permute.xlu0 0
    %674 = vperm.xlu0 %673, %v640
    %v675 = vpop.permute.xlu0 %674
    %v676 = vrot.slane %v649, 5
    %v677 = vrot.slane %v663, 5
    %v678 = vsel %vm64, %v676, %v677
    %v679 = vrot.slane %v667, 5
    %v680 = vsel %vm64, %v677, %v679
    %v681 = vrot.slane %v671, 5
    %v682 = vsel %vm64, %v679, %v681
    %v683 = vrot.slane %v675, 5
    %v684 = vsel %vm64, %v681, %v683
    %v690 = vsel %vm78, %v656, 0
    %v693 = vsel %vm78, %v657, 0
    %v696 = vsel %vm78, %v658, 0
    %v699 = vsel %vm78, %v659, 0
    %v702 = vsel %vm91, %v633, 0
    %v705 = vsel %vm91, %v634, 0
    %707 = vmatpush.msra.mxu0 0.0
    %708 = vmatpush.msra.mxu0 0.0
    %709 = vmatpush.msra.mxu0 0.0
    %710 = vmatpush.msra.mxu0 0.0
    %711 = vmatpush.msra.mxu0 0.0
    %712 = vmatpush.msra.mxu0 0.0
    %713 = vmatpush.msra.mxu0 0.0
    %714 = vmatpush.msra.mxu0 0.0
    %715 = vmatpush.msra.mxu0 0.0
    %716 = vmatpush.msra.mxu0 0.0
    %717 = vmatpush.msra.mxu0 0.0
    %718 = vmatpush.msra.mxu0 0.0
    %719 = vmatpush.msra.mxu0 0.0
    %720 = vmatpush.msra.mxu0 0.0
    %721 = vmatpush.msra.mxu0 0.0
    %722 = vmatpush.msra.mxu0 %v702
    %723 = vmatmul.f32.gmra.mxu0 %v690
    %v724 = vpop.f32.mrf.mxu0
    %v725 = vadd.f32 %v678, %v724
    %726 = vmatmul.f32.gmra.mxu0 %v693
    %v727 = vpop.f32.mrf.mxu0
    %v728 = vadd.f32 %v680, %v727
    %729 = vmatmul.f32.gmra.mxu0 %v696
    %v730 = vpop.f32.mrf.mxu0
    %v731 = vadd.f32 %v682, %v730
    %732 = vmatmul.f32.gmra.mxu0 %v699
    %v733 = vpop.f32.mrf.mxu0
    %v734 = vadd.f32 %v684, %v733
    %735 = vdwg.mxu0
    %736 = vmatpush.msra.mxu0 0.0
    %737 = vmatpush.msra.mxu0 0.0
    %738 = vmatpush.msra.mxu0 0.0
    %739 = vmatpush.msra.mxu0 0.0
    %740 = vmatpush.msra.mxu0 0.0
    %741 = vmatpush.msra.mxu0 0.0
    %742 = vmatpush.msra.mxu0 0.0
    %743 = vmatpush.msra.mxu0 0.0
    %744 = vmatpush.msra.mxu0 0.0
    %745 = vmatpush.msra.mxu0 0.0
    %746 = vmatpush.msra.mxu0 0.0
    %747 = vmatpush.msra.mxu0 0.0
    %748 = vmatpush.msra.mxu0 0.0
    %749 = vmatpush.msra.mxu0 0.0
    %750 = vmatpush.msra.mxu0 0.0
    %751 = vmatpush.msra.mxu0 %v705
    %752 = vmatmul.f32.gmra.mxu0 %v690
    %v753 = vpop.f32.mrf.mxu0
    %v754 = vadd.f32 %v678, %v753
    %755 = vmatmul.f32.gmra.mxu0 %v693
    %v756 = vpop.f32.mrf.mxu0
    %v757 = vadd.f32 %v680, %v756
    %758 = vmatmul.f32.gmra.mxu0 %v696
    %v759 = vpop.f32.mrf.mxu0
    %v760 = vadd.f32 %v682, %v759
    %761 = vmatmul.f32.gmra.mxu0 %v699
    %v762 = vpop.f32.mrf.mxu0
    %v763 = vadd.f32 %v684, %v762
    %764 = vdwg.mxu0
    %v765 = vmax.f32 %v725, 0.0
    %v766 = vmax.f32 %v754, 0.0
    %v767 = vmax.f32 %v728, 0.0
    %v768 = vmax.f32 %v757, 0.0
    %v769 = vmax.f32 %v731, 0.0
    %v770 = vmax.f32 %v760, 0.0
    %v771 = vmax.f32 %v734, 0.0
    %v772 = vmax.f32 %v763, 0.0
    %s773 = scalar_lea.vmem %s2, 64
    %v774 = vld [vmem:[%s773] sm:$0xff]
    %v775 = vld [vmem:[%s773 + $0x8] sm:$0xff]
    %v776 = vld [vmem:[%s773 + $0x10] sm:$0xff]
    %v777 = vld [vmem:[%s773 + $0x18] sm:$0xff]
    %779 = vset.pattern.permute.xlu0 0
    %780 = vperm.xlu0 %779, %v641
    %v781 = vpop.permute.xlu0 %780
    %783 = vset.pattern.permute.xlu0 0
    %784 = vperm.xlu0 %783, %v642
    %v785 = vpop.permute.xlu0 %784
    %787 = vset.pattern.permute.xlu0 0
    %788 = vperm.xlu0 %787, %v643
    %v789 = vpop.permute.xlu0 %788
    %791 = vset.pattern.permute.xlu0 0
    %792 = vperm.xlu0 %791, %v644
    %v793 = vpop.permute.xlu0 %792
    %v794 = vrot.slane %v781, 5
    %v795 = vsel %vm64, %v683, %v794
    %v796 = vrot.slane %v785, 5
    %v797 = vsel %vm64, %v794, %v796
    %v798 = vrot.slane %v789, 5
    %v799 = vsel %vm64, %v796, %v798
    %v800 = vrot.slane %v793, 5
    %v801 = vsel %vm64, %v798, %v800
    %v807 = vsel %vm196, %v774, 0
    %v810 = vsel %vm196, %v775, 0
    %v813 = vsel %vm196, %v776, 0
    %v816 = vsel %vm196, %v777, 0
    %818 = vmatpush.msra.mxu0 0.0
    %819 = vmatpush.msra.mxu0 0.0
    %820 = vmatpush.msra.mxu0 0.0
    %821 = vmatpush.msra.mxu0 0.0
    %822 = vmatpush.msra.mxu0 0.0
    %823 = vmatpush.msra.mxu0 0.0
    %824 = vmatpush.msra.mxu0 0.0
    %825 = vmatpush.msra.mxu0 0.0
    %826 = vmatpush.msra.mxu0 0.0
    %827 = vmatpush.msra.mxu0 0.0
    %828 = vmatpush.msra.mxu0 0.0
    %829 = vmatpush.msra.mxu0 0.0
    %830 = vmatpush.msra.mxu0 %v771
    %831 = vmatpush.msra.mxu0 %v769
    %832 = vmatpush.msra.mxu0 %v767
    %833 = vmatpush.msra.mxu0 %v765
    %834 = vmatmul.f32.gmra.mxu0 %v807
    %v835 = vpop.f32.mrf.mxu0
    %v836 = vadd.f32 %v795, %v835
    %837 = vmatmul.f32.gmra.mxu0 %v810
    %v838 = vpop.f32.mrf.mxu0
    %v839 = vadd.f32 %v797, %v838
    %840 = vmatmul.f32.gmra.mxu0 %v813
    %v841 = vpop.f32.mrf.mxu0
    %v842 = vadd.f32 %v799, %v841
    %843 = vmatmul.f32.gmra.mxu0 %v816
    %v844 = vpop.f32.mrf.mxu0
    %v845 = vadd.f32 %v801, %v844
    %846 = vdwg.mxu0
    %847 = vmatpush.msra.mxu0 0.0
    %848 = vmatpush.msra.mxu0 0.0
    %849 = vmatpush.msra.mxu0 0.0
    %850 = vmatpush.msra.mxu0 0.0
    %851 = vmatpush.msra.mxu0 0.0
    %852 = vmatpush.msra.mxu0 0.0
    %853 = vmatpush.msra.mxu0 0.0
    %854 = vmatpush.msra.mxu0 0.0
    %855 = vmatpush.msra.mxu0 0.0
    %856 = vmatpush.msra.mxu0 0.0
    %857 = vmatpush.msra.mxu0 0.0
    %858 = vmatpush.msra.mxu0 0.0
    %859 = vmatpush.msra.mxu0 %v772
    %860 = vmatpush.msra.mxu0 %v770
    %861 = vmatpush.msra.mxu0 %v768
    %862 = vmatpush.msra.mxu0 %v766
    %863 = vmatmul.f32.gmra.mxu0 %v807
    %v864 = vpop.f32.mrf.mxu0
    %v865 = vadd.f32 %v795, %v864
    %866 = vmatmul.f32.gmra.mxu0 %v810
    %v867 = vpop.f32.mrf.mxu0
    %v868 = vadd.f32 %v797, %v867
    %869 = vmatmul.f32.gmra.mxu0 %v813
    %v870 = vpop.f32.mrf.mxu0
    %v871 = vadd.f32 %v799, %v870
    %872 = vmatmul.f32.gmra.mxu0 %v816
    %v873 = vpop.f32.mrf.mxu0
    %v874 = vadd.f32 %v801, %v873
    %875 = vdwg.mxu0
    %v876 = vmax.f32 %v836, 0.0
    %v877 = vmax.f32 %v865, 0.0
    %v878 = vmax.f32 %v839, 0.0
    %v879 = vmax.f32 %v868, 0.0
    %v880 = vmax.f32 %v842, 0.0
    %v881 = vmax.f32 %v871, 0.0
    %v882 = vmax.f32 %v845, 0.0
    %v883 = vmax.f32 %v874, 0.0
    %s884 = scalar_lea.vmem %s3, 16
    %v885 = vld [vmem:[%s884] sm:$0x1f]
    %887 = vset.pattern.permute.xlu0 0
    %888 = vperm.xlu0 %887, %v645
    %v889 = vpop.permute.xlu0 %888
    %v890 = vrot.slane %v889, 5
    %v891 = vsel %vm64, %v800, %v890
    %v894 = vsel %vm196, %v885, 0
    %896 = vmatpush.msra.mxu0 0.0
    %897 = vmatpush.msra.mxu0 0.0
    %898 = vmatpush.msra.mxu0 0.0
    %899 = vmatpush.msra.mxu0 0.0
    %900 = vmatpush.msra.mxu0 0.0
    %901 = vmatpush.msra.mxu0 0.0
    %902 = vmatpush.msra.mxu0 0.0
    %903 = vmatpush.msra.mxu0 0.0
    %904 = vmatpush.msra.mxu0 0.0
    %905 = vmatpush.msra.mxu0 0.0
    %906 = vmatpush.msra.mxu0 0.0
    %907 = vmatpush.msra.mxu0 0.0
    %908 = vmatpush.msra.mxu0 %v882
    %909 = vmatpush.msra.mxu0 %v880
    %910 = vmatpush.msra.mxu0 %v878
    %911 = vmatpush.msra.mxu0 %v876
    %912 = vmatmul.f32.gmra.mxu0 %v894
    %v913 = vpop.f32.mrf.mxu0
    %v914 = vadd.f32 %v891, %v913
    %915 = vdwg.mxu0
    %916 = vmatpush.msra.mxu0 0.0
    %917 = vmatpush.msra.mxu0 0.0
    %918 = vmatpush.msra.mxu0 0.0
    %919 = vmatpush.msra.mxu0 0.0
    %920 = vmatpush.msra.mxu0 0.0
    %921 = vmatpush.msra.mxu0 0.0
    %922 = vmatpush.msra.mxu0 0.0
    %923 = vmatpush.msra.mxu0 0.0
    %924 = vmatpush.msra.mxu0 0.0
    %925 = vmatpush.msra.mxu0 0.0
    %926 = vmatpush.msra.mxu0 0.0
    %927 = vmatpush.msra.mxu0 0.0
    %928 = vmatpush.msra.mxu0 %v883
    %929 = vmatpush.msra.mxu0 %v881
    %930 = vmatpush.msra.mxu0 %v879
    %931 = vmatpush.msra.mxu0 %v877
    %932 = vmatmul.f32.gmra.mxu0 %v894
    %v933 = vpop.f32.mrf.mxu0
    %v934 = vadd.f32 %v891, %v933
    %935 = vdwg.mxu0
    %v936 = vmul.f32 %v653, %v914
    %v937 = vmul.f32 %v654, %v934
    %v938 = vadd.f32 %v633, %v936
    %v939 = vadd.f32 %v634, %v937
    %s940 = scalar_lea.vmem %s4, 240
    %v941 = vld [vmem:[%s940] sm:$0xff]
    %v942 = vld [vmem:[%s940 + $0x8] sm:$0xff]
    %v943 = vld [vmem:[%s940 + $0x10] sm:$0xff]
    %v944 = vld [vmem:[%s940 + $0x18] sm:$0xff]
    %v945 = vld [vmem:[%s940 + $0x20] sm:$0xff]
    %v946 = vld [vmem:[%s940 + $0x28] sm:$0xff]
    %v947 = vld [vmem:[%s940 + $0x30] sm:$0xff]
    %v948 = vld [vmem:[%s940 + $0x38] sm:$0xff]
    %v949 = vld [vmem:[%s940 + $0x40] sm:$0xff]
    %v950 = vld [vmem:[%s940 + $0x48] sm:$0x3]
    %952 = vset.pattern.permute.xlu0 0
    %953 = vperm.xlu0 %952, %v941
    %v954 = vpop.permute.xlu0 %953
    %v956 = vmul.f32 %v954, %v38
    %v957 = vmul.f32 %v954, %v39
    %v958 = vtanh.pop %v956
    %v959 = vtanh.pop %v957
    %s960 = scalar_lea.vmem %s1, 96
    %v961 = vld [vmem:[%s960] sm:$0xff]
    %v962 = vld [vmem:[%s960 + $0x8] sm:$0xff]
    %v963 = vld [vmem:[%s960 + $0x10] sm:$0xff]
    %v964 = vld [vmem:[%s960 + $0x18] sm:$0xff]
    %966 = vset.pattern.permute.xlu0 0
    %967 = vperm.xlu0 %966, %v942
    %v968 = vpop.permute.xlu0 %967
    %970 = vset.pattern.permute.xlu0 0
    %971 = vperm.xlu0 %970, %v943
    %v972 = vpop.permute.xlu0 %971
    %974 = vset.pattern.permute.xlu0 0
    %975 = vperm.xlu0 %974, %v944
    %v976 = vpop.permute.xlu0 %975
    %978 = vset.pattern.permute.xlu0 0
    %979 = vperm.xlu0 %978, %v945
    %v980 = vpop.permute.xlu0 %979
    %v981 = vrot.slane %v954, 5
    %v982 = vrot.slane %v968, 5
    %v983 = vsel %vm64, %v981, %v982
    %v984 = vrot.slane %v972, 5
    %v985 = vsel %vm64, %v982, %v984
    %v986 = vrot.slane %v976, 5
    %v987 = vsel %vm64, %v984, %v986
    %v988 = vrot.slane %v980, 5
    %v989 = vsel %vm64, %v986, %v988
    %v995 = vsel %vm78, %v961, 0
    %v998 = vsel %vm78, %v962, 0
    %v1001 = vsel %vm78, %v963, 0
    %v1004 = vsel %vm78, %v964, 0
    %v1007 = vsel %vm91, %v938, 0
    %v1010 = vsel %vm91, %v939, 0
    %1012 = vmatpush.msra.mxu0 0.0
    %1013 = vmatpush.msra.mxu0 0.0
    %1014 = vmatpush.msra.mxu0 0.0
    %1015 = vmatpush.msra.mxu0 0.0
    %1016 = vmatpush.msra.mxu0 0.0
    %1017 = vmatpush.msra.mxu0 0.0
    %1018 = vmatpush.msra.mxu0 0.0
    %1019 = vmatpush.msra.mxu0 0.0
    %1020 = vmatpush.msra.mxu0 0.0
    %1021 = vmatpush.msra.mxu0 0.0
    %1022 = vmatpush.msra.mxu0 0.0
    %1023 = vmatpush.msra.mxu0 0.0
    %1024 = vmatpush.msra.mxu0 0.0
    %1025 = vmatpush.msra.mxu0 0.0
    %1026 = vmatpush.msra.mxu0 0.0
    %1027 = vmatpush.msra.mxu0 %v1007
    %1028 = vmatmul.f32.gmra.mxu0 %v995
    %v1029 = vpop.f32.mrf.mxu0
    %v1030 = vadd.f32 %v983, %v1029
    %1031 = vmatmul.f32.gmra.mxu0 %v998
    %v1032 = vpop.f32.mrf.mxu0
    %v1033 = vadd.f32 %v985, %v1032
    %1034 = vmatmul.f32.gmra.mxu0 %v1001
    %v1035 = vpop.f32.mrf.mxu0
    %v1036 = vadd.f32 %v987, %v1035
    %1037 = vmatmul.f32.gmra.mxu0 %v1004
    %v1038 = vpop.f32.mrf.mxu0
    %v1039 = vadd.f32 %v989, %v1038
    %1040 = vdwg.mxu0
    %1041 = vmatpush.msra.mxu0 0.0
    %1042 = vmatpush.msra.mxu0 0.0
    %1043 = vmatpush.msra.mxu0 0.0
    %1044 = vmatpush.msra.mxu0 0.0
    %1045 = vmatpush.msra.mxu0 0.0
    %1046 = vmatpush.msra.mxu0 0.0
    %1047 = vmatpush.msra.mxu0 0.0
    %1048 = vmatpush.msra.mxu0 0.0
    %1049 = vmatpush.msra.mxu0 0.0
    %1050 = vmatpush.msra.mxu0 0.0
    %1051 = vmatpush.msra.mxu0 0.0
    %1052 = vmatpush.msra.mxu0 0.0
    %1053 = vmatpush.msra.mxu0 0.0
    %1054 = vmatpush.msra.mxu0 0.0
    %1055 = vmatpush.msra.mxu0 0.0
    %1056 = vmatpush.msra.mxu0 %v1010
    %1057 = vmatmul.f32.gmra.mxu0 %v995
    %v1058 = vpop.f32.mrf.mxu0
    %v1059 = vadd.f32 %v983, %v1058
    %1060 = vmatmul.f32.gmra.mxu0 %v998
    %v1061 = vpop.f32.mrf.mxu0
    %v1062 = vadd.f32 %v985, %v1061
    %1063 = vmatmul.f32.gmra.mxu0 %v1001
    %v1064 = vpop.f32.mrf.mxu0
    %v1065 = vadd.f32 %v987, %v1064
    %1066 = vmatmul.f32.gmra.mxu0 %v1004
    %v1067 = vpop.f32.mrf.mxu0
    %v1068 = vadd.f32 %v989, %v1067
    %1069 = vdwg.mxu0
    %v1070 = vmax.f32 %v1030, 0.0
    %v1071 = vmax.f32 %v1059, 0.0
    %v1072 = vmax.f32 %v1033, 0.0
    %v1073 = vmax.f32 %v1062, 0.0
    %v1074 = vmax.f32 %v1036, 0.0
    %v1075 = vmax.f32 %v1065, 0.0
    %v1076 = vmax.f32 %v1039, 0.0
    %v1077 = vmax.f32 %v1068, 0.0
    %s1078 = scalar_lea.vmem %s2, 96
    %v1079 = vld [vmem:[%s1078] sm:$0xff]
    %v1080 = vld [vmem:[%s1078 + $0x8] sm:$0xff]
    %v1081 = vld [vmem:[%s1078 + $0x10] sm:$0xff]
    %v1082 = vld [vmem:[%s1078 + $0x18] sm:$0xff]
    %1084 = vset.pattern.permute.xlu0 0
    %1085 = vperm.xlu0 %1084, %v946
    %v1086 = vpop.permute.xlu0 %1085
    %1088 = vset.pattern.permute.xlu0 0
    %1089 = vperm.xlu0 %1088, %v947
    %v1090 = vpop.permute.xlu0 %1089
    %1092 = vset.pattern.permute.xlu0 0
    %1093 = vperm.xlu0 %1092, %v948
    %v1094 = vpop.permute.xlu0 %1093
    %1096 = vset.pattern.permute.xlu0 0
    %1097 = vperm.xlu0 %1096, %v949
    %v1098 = vpop.permute.xlu0 %1097
    %v1099 = vrot.slane %v1086, 5
    %v1100 = vsel %vm64, %v988, %v1099
    %v1101 = vrot.slane %v1090, 5
    %v1102 = vsel %vm64, %v1099, %v1101
    %v1103 = vrot.slane %v1094, 5
    %v1104 = vsel %vm64, %v1101, %v1103
    %v1105 = vrot.slane %v1098, 5
    %v1106 = vsel %vm64, %v1103, %v1105
    %v1112 = vsel %vm196, %v1079, 0
    %v1115 = vsel %vm196, %v1080, 0
    %v1118 = vsel %vm196, %v1081, 0
    %v1121 = vsel %vm196, %v1082, 0
    %1123 = vmatpush.msra.mxu0 0.0
    %1124 = vmatpush.msra.mxu0 0.0
    %1125 = vmatpush.msra.mxu0 0.0
    %1126 = vmatpush.msra.mxu0 0.0
    %1127 = vmatpush.msra.mxu0 0.0
    %1128 = vmatpush.msra.mxu0 0.0
    %1129 = vmatpush.msra.mxu0 0.0
    %1130 = vmatpush.msra.mxu0 0.0
    %1131 = vmatpush.msra.mxu0 0.0
    %1132 = vmatpush.msra.mxu0 0.0
    %1133 = vmatpush.msra.mxu0 0.0
    %1134 = vmatpush.msra.mxu0 0.0
    %1135 = vmatpush.msra.mxu0 %v1076
    %1136 = vmatpush.msra.mxu0 %v1074
    %1137 = vmatpush.msra.mxu0 %v1072
    %1138 = vmatpush.msra.mxu0 %v1070
    %1139 = vmatmul.f32.gmra.mxu0 %v1112
    %v1140 = vpop.f32.mrf.mxu0
    %v1141 = vadd.f32 %v1100, %v1140
    %1142 = vmatmul.f32.gmra.mxu0 %v1115
    %v1143 = vpop.f32.mrf.mxu0
    %v1144 = vadd.f32 %v1102, %v1143
    %1145 = vmatmul.f32.gmra.mxu0 %v1118
    %v1146 = vpop.f32.mrf.mxu0
    %v1147 = vadd.f32 %v1104, %v1146
    %1148 = vmatmul.f32.gmra.mxu0 %v1121
    %v1149 = vpop.f32.mrf.mxu0
    %v1150 = vadd.f32 %v1106, %v1149
    %1151 = vdwg.mxu0
    %1152 = vmatpush.msra.mxu0 0.0
    %1153 = vmatpush.msra.mxu0 0.0
    %1154 = vmatpush.msra.mxu0 0.0
    %1155 = vmatpush.msra.mxu0 0.0
    %1156 = vmatpush.msra.mxu0 0.0
    %1157 = vmatpush.msra.mxu0 0.0
    %1158 = vmatpush.msra.mxu0 0.0
    %1159 = vmatpush.msra.mxu0 0.0
    %1160 = vmatpush.msra.mxu0 0.0
    %1161 = vmatpush.msra.mxu0 0.0
    %1162 = vmatpush.msra.mxu0 0.0
    %1163 = vmatpush.msra.mxu0 0.0
    %1164 = vmatpush.msra.mxu0 %v1077
    %1165 = vmatpush.msra.mxu0 %v1075
    %1166 = vmatpush.msra.mxu0 %v1073
    %1167 = vmatpush.msra.mxu0 %v1071
    %1168 = vmatmul.f32.gmra.mxu0 %v1112
    %v1169 = vpop.f32.mrf.mxu0
    %v1170 = vadd.f32 %v1100, %v1169
    %1171 = vmatmul.f32.gmra.mxu0 %v1115
    %v1172 = vpop.f32.mrf.mxu0
    %v1173 = vadd.f32 %v1102, %v1172
    %1174 = vmatmul.f32.gmra.mxu0 %v1118
    %v1175 = vpop.f32.mrf.mxu0
    %v1176 = vadd.f32 %v1104, %v1175
    %1177 = vmatmul.f32.gmra.mxu0 %v1121
    %v1178 = vpop.f32.mrf.mxu0
    %v1179 = vadd.f32 %v1106, %v1178
    %1180 = vdwg.mxu0
    %v1181 = vmax.f32 %v1141, 0.0
    %v1182 = vmax.f32 %v1170, 0.0
    %v1183 = vmax.f32 %v1144, 0.0
    %v1184 = vmax.f32 %v1173, 0.0
    %v1185 = vmax.f32 %v1147, 0.0
    %v1186 = vmax.f32 %v1176, 0.0
    %v1187 = vmax.f32 %v1150, 0.0
    %v1188 = vmax.f32 %v1179, 0.0
    %s1189 = scalar_lea.vmem %s3, 24
    %v1190 = vld [vmem:[%s1189] sm:$0x1f]
    %1192 = vset.pattern.permute.xlu0 0
    %1193 = vperm.xlu0 %1192, %v950
    %v1194 = vpop.permute.xlu0 %1193
    %v1195 = vrot.slane %v1194, 5
    %v1196 = vsel %vm64, %v1105, %v1195
    %v1199 = vsel %vm196, %v1190, 0
    %1201 = vmatpush.msra.mxu0 0.0
    %1202 = vmatpush.msra.mxu0 0.0
    %1203 = vmatpush.msra.mxu0 0.0
    %1204 = vmatpush.msra.mxu0 0.0
    %1205 = vmatpush.msra.mxu0 0.0
    %1206 = vmatpush.msra.mxu0 0.0
    %1207 = vmatpush.msra.mxu0 0.0
    %1208 = vmatpush.msra.mxu0 0.0
    %1209 = vmatpush.msra.mxu0 0.0
    %1210 = vmatpush.msra.mxu0 0.0
    %1211 = vmatpush.msra.mxu0 0.0
    %1212 = vmatpush.msra.mxu0 0.0
    %1213 = vmatpush.msra.mxu0 %v1187
    %1214 = vmatpush.msra.mxu0 %v1185
    %1215 = vmatpush.msra.mxu0 %v1183
    %1216 = vmatpush.msra.mxu0 %v1181
    %1217 = vmatmul.f32.gmra.mxu0 %v1199
    %v1218 = vpop.f32.mrf.mxu0
    %v1219 = vadd.f32 %v1196, %v1218
    %1220 = vdwg.mxu0
    %1221 = vmatpush.msra.mxu0 0.0
    %1222 = vmatpush.msra.mxu0 0.0
    %1223 = vmatpush.msra.mxu0 0.0
    %1224 = vmatpush.msra.mxu0 0.0
    %1225 = vmatpush.msra.mxu0 0.0
    %1226 = vmatpush.msra.mxu0 0.0
    %1227 = vmatpush.msra.mxu0 0.0
    %1228 = vmatpush.msra.mxu0 0.0
    %1229 = vmatpush.msra.mxu0 0.0
    %1230 = vmatpush.msra.mxu0 0.0
    %1231 = vmatpush.msra.mxu0 0.0
    %1232 = vmatpush.msra.mxu0 0.0
    %1233 = vmatpush.msra.mxu0 %v1188
    %1234 = vmatpush.msra.mxu0 %v1186
    %1235 = vmatpush.msra.mxu0 %v1184
    %1236 = vmatpush.msra.mxu0 %v1182
    %1237 = vmatmul.f32.gmra.mxu0 %v1199
    %v1238 = vpop.f32.mrf.mxu0
    %v1239 = vadd.f32 %v1196, %v1238
    %1240 = vdwg.mxu0
    %v1241 = vmul.f32 %v958, %v1219
    %v1242 = vmul.f32 %v959, %v1239
    %v1243 = vadd.f32 %v938, %v1241
    %v1244 = vadd.f32 %v939, %v1242
    %v1247 = vrot.slane %v1244, 4
    %vm1248 = vcmask 1043456
    %v1249 = vsel %vm1248, %v1243, %v1247
    %1251 = vst [vmem:[#allocation2] sm:$0xff] %v1249
    // Predicated region
    $region22: #{tpu_custom_call.1} parent=1 // pred_check
      _
    $region23: #{tpu_custom_call.1} parent=1 // pred_check_branch
      %1253 = sbr.rel (0) target = $region25
    $region24: #{tpu_custom_call.1} parent=1 // pred_region
      %1255 = vsyncadd [#allocation3], 0
      %s1257 = sshll.u32 [#allocation2], 4
      %s1258 = int_to_ptr.vmem [resolvable:$true] %s1257
      %s1259 = sshll.u32 %s5, 4
      %s1260 = int_to_ptr.hbm [resolvable:$true] %s1259
      %1262 = dma.vmem_to_hbm [thread:$0]  %s1258, 128, %s1260, [#allocation3]
    $region25: #{tpu_custom_call.1} parent=1 // pred_fallthru
      _
    // Predicated region
    $region26: #{tpu_custom_call.1} parent=1 // pred_check
      _
    $region27: #{tpu_custom_call.1} parent=1 // pred_check_branch
      %1264 = sbr.rel (0) target = $region29
    $region28: #{tpu_custom_call.1} parent=1 // pred_region
      %1266 = dma.done [#allocation3], 128
    $region29: #{tpu_custom_call.1} parent=1 // pred_fallthru
      _
    %1267 = vsyncpa [#allocation3], 1

</llo_original>
